<compile_context>
chip_gen: v6e
topology: v6e:2x2x1
jax: 0.10.0
libtpu: 0.0.40
codegen_flags: <defaults>
</compile_context>

<pallas_src>
import jax
import jax.numpy as jnp
from jax.experimental import pallas as pl
from jax.experimental.pallas import tpu as pltpu


LATENT_DIM = 64
H1, H2, H3 = 128, 256, 512
OUTPUT_DIM = 784            # 28 * 28 (logical output, stored directly)
OUTPUT_PAD = 896            # 7 * 128, lane-dense padded width of layer-4 matmul
BIAS_TOTAL = H1 + H2 + H3 + OUTPUT_PAD   # 1792 = 14 * 128 (fused bias row)


def _decoder_kernel(x_ref, w1_ref, w2_ref, w3_ref, w4_ref, b_ref, out_ref):
    # Whole 4-layer MLP fused per batch tile: 4 MXU matmuls (bf16 inputs,
    # f32 accumulation), bias+ReLU on the VPU in f32, sigmoid on the EUP.
    # Weights/biases are VMEM-resident across the batch grid (constant blocks).
    x = x_ref[...].astype(jnp.bfloat16)

    b1 = b_ref[:, 0:H1]
    b2 = b_ref[:, H1:H1 + H2]
    b3 = b_ref[:, H1 + H2:H1 + H2 + H3]
    b4 = b_ref[:, H1 + H2 + H3:BIAS_TOTAL]

    h = jnp.dot(x, w1_ref[...], preferred_element_type=jnp.float32) + b1
    h = jnp.maximum(h, 0.0).astype(jnp.bfloat16)

    h = jnp.dot(h, w2_ref[...], preferred_element_type=jnp.float32) + b2
    h = jnp.maximum(h, 0.0).astype(jnp.bfloat16)

    h = jnp.dot(h, w3_ref[...], preferred_element_type=jnp.float32) + b3
    h = jnp.maximum(h, 0.0).astype(jnp.bfloat16)

    # Lane-dense 896-wide matmul; only the 784 real columns go through the
    # sigmoid (EUP) and are stored — no extra HBM pass in the wrapper.
    logits = jnp.dot(h, w4_ref[...], preferred_element_type=jnp.float32) + b4
    out_ref[...] = jax.nn.sigmoid(logits[:, :OUTPUT_DIM]).astype(out_ref.dtype)


def _round_up(n, m):
    return ((n + m - 1) // m) * m


def _pick_tile(B):
    """Batch tile size.

    Small B: single tile, 16-row multiple (bf16 packs 16 sublanes per vreg).
    Large B: up to 512 rows (amortizes grid-step overhead / MXU fill), picked
    so there are >= 2 tiles whenever B > 128 so the parallel axis can split
    across both v7x TensorCores (no effect on single-TC v5e/v6e).
    """
    if B <= 128:
        return max(16, _round_up(B, 16))
    b128 = _round_up(B, 128)
    half = (b128 // 2) // 128 * 128
    return min(512, max(128, half))


def decoder_forward(x, params):
    """x: (B, LATENT_DIM) f32 -> (B, 1, 28, 28) f32 (NCHW)."""
    B = x.shape[0]
    w1, w2, w3, w4, bias = params

    TB = _pick_tile(B)
    n_tiles = pl.cdiv(B, TB)
    B_pad = n_tiles * TB
    if B_pad != B:
        x = jnp.pad(x, ((0, B_pad - B), (0, 0)))

    def const_spec(shape):
        # Same block every grid step -> weights stay resident in VMEM.
        return pl.BlockSpec(shape, lambda i: (0, 0))

    flops = 2 * B_pad * (LATENT_DIM * H1 + H1 * H2 + H2 * H3 + H3 * OUTPUT_PAD)
    bytes_accessed = (
        sum(int(w.size) * w.dtype.itemsize for w in (w1, w2, w3, w4))
        + int(bias.size) * bias.dtype.itemsize
        + B_pad * (LATENT_DIM * 4 + OUTPUT_DIM * 4)
    )

    flat = pl.pallas_call(
        _decoder_kernel,
        out_shape=jax.ShapeDtypeStruct((B_pad, OUTPUT_DIM), jnp.float32),
        grid=(n_tiles,),
        in_specs=[
            pl.BlockSpec((TB, LATENT_DIM), lambda i: (i, 0)),   # x tile
            const_spec((LATENT_DIM, H1)),                       # w1 (bf16)
            const_spec((H1, H2)),                               # w2 (bf16)
            const_spec((H2, H3)),                               # w3 (bf16)
            const_spec((H3, OUTPUT_PAD)),                       # w4 (bf16, padded)
            const_spec((1, BIAS_TOTAL)),                        # fused biases (f32)
        ],
        # Full last-dim (784) block is legal even though 784 % 128 != 0; only
        # the trailing 16-lane chunk per row becomes a masked store.
        out_specs=pl.BlockSpec((TB, OUTPUT_DIM), lambda i: (i, 0)),
        compiler_params=pltpu.CompilerParams(
            dimension_semantics=("parallel",),
        ),
        cost_estimate=pl.CostEstimate(
            flops=flops,
            transcendentals=B_pad * OUTPUT_DIM,
            bytes_accessed=bytes_accessed,
        ),
    )(x, w1, w2, w3, w4, bias)

    if B_pad != B:
        flat = flat[:B]
    return flat.reshape(B, 1, 28, 28)


def init_params(key):
    """PyTorch-style init U(-1/sqrt(fan_in), 1/sqrt(fan_in)).

    Weights are stored transposed as (in_features, out_features) in bf16
    (import of a real PyTorch state dict must transpose nn.Linear weights).
    The last layer is zero-padded from 784 to 896 output columns.  The four
    biases are fused into a single (1, 1792) f32 row.
    """
    dims = [LATENT_DIM, H1, H2, H3, OUTPUT_DIM]
    ws, bs = [], []
    for i in range(4):
        fan_in, fan_out = dims[i], dims[i + 1]
        key, kw, kb = jax.random.split(key, 3)
        bound = 1.0 / (fan_in ** 0.5)
        ws.append(jax.random.uniform(kw, (fan_in, fan_out), jnp.float32, -bound, bound))
        bs.append(jax.random.uniform(kb, (fan_out,), jnp.float32, -bound, bound))

    # Lane-dense padding of the final layer (zero columns contribute nothing).
    ws[3] = jnp.pad(ws[3], ((0, 0), (0, OUTPUT_PAD - OUTPUT_DIM)))
    bs[3] = jnp.pad(bs[3], ((0, OUTPUT_PAD - OUTPUT_DIM),))

    ws = [w.astype(jnp.bfloat16) for w in ws]
    bias = jnp.concatenate(bs).reshape(1, BIAS_TOTAL)
    return (ws[0], ws[1], ws[2], ws[3], bias)


def decoder_reference(x, params):
    """Pure-JAX reference (same bf16 weights, f32 math) for validation."""
    w1, w2, w3, w4, bias = params
    b1 = bias[:, 0:H1]
    b2 = bias[:, H1:H1 + H2]
    b3 = bias[:, H1 + H2:H1 + H2 + H3]
    b4 = bias[:, H1 + H2 + H3:BIAS_TOTAL]
    h = jnp.maximum(x @ w1.astype(jnp.float32) + b1, 0.0)
    h = jnp.maximum(h @ w2.astype(jnp.float32) + b2, 0.0)
    h = jnp.maximum(h @ w3.astype(jnp.float32) + b3, 0.0)
    logits = h @ w4.astype(jnp.float32) + b4
    out = jax.nn.sigmoid(logits)[:, :OUTPUT_DIM]
    return out.reshape(x.shape[0], 1, 28, 28)


if __name__ == "__main__":
    key = jax.random.PRNGKey(0)
    key, kx = jax.random.split(key)

    B = 8
    x = jax.random.normal(kx, (B, LATENT_DIM), dtype=jnp.float32)
    params = init_params(key)

    out = jax.jit(decoder_forward)(x, params)
    out = jax.block_until_ready(out)

    assert out.shape == (B, 1, 28, 28), out.shape
    assert out.dtype == jnp.float32
    assert bool(jnp.all(jnp.isfinite(out)))
    assert bool(jnp.all(out >= 0.0)) and bool(jnp.all(out <= 1.0))

    # Note: kernel casts inter-layer activations to bf16 (reference keeps f32
    # matmul inputs), so agreement is ~1e-2, which the tolerance below covers.
    ref = decoder_reference(x, params)
    assert bool(jnp.allclose(out, ref, atol=2e-2, rtol=2e-2)), (
        float(jnp.max(jnp.abs(out - ref)))
    )

    # Exercise the large-batch multi-tile path (TB=512-ish, >=2 tiles) as well.
    key, kx2 = jax.random.split(key)
    B2 = 600
    x2 = jax.random.normal(kx2, (B2, LATENT_DIM), dtype=jnp.float32)
    out2 = jax.block_until_ready(jax.jit(decoder_forward)(x2, params))
    ref2 = decoder_reference(x2, params)
    assert out2.shape == (B2, 1, 28, 28)
    assert bool(jnp.allclose(out2, ref2, atol=2e-2, rtol=2e-2)), (
        float(jnp.max(jnp.abs(out2 - ref2)))
    )

    print("KERNEL_OK")
</pallas_src>

<mosaic_0001>
module attributes {stable_mosaic.version = 11 : i64} {
  func.func @_decoder_kernel(%arg0: i32, %arg1: memref<16x64xf32, #tpu.memory_space<vmem>>, %arg2: memref<64x128xbf16, #tpu.memory_space<vmem>>, %arg3: memref<128x256xbf16, #tpu.memory_space<vmem>>, %arg4: memref<256x512xbf16, #tpu.memory_space<vmem>>, %arg5: memref<512x896xbf16, #tpu.memory_space<vmem>>, %arg6: memref<1x1792xf32, #tpu.memory_space<vmem>>, %arg7: memref<16x784xf32, #tpu.memory_space<vmem>>) attributes {dimension_semantics = [#tpu.dimension_semantics<parallel>], iteration_bounds = array<i64: 1>, scalar_prefetch = 0 : i64, scratch_operands = 0 : i64, tpu.core_type = #tpu.core_type<tc>, window_params = [{transform_indices = @transform_0, window_bounds = array<i64: 16, 64>}, {pipeline_mode = #tpu.pipeline_mode<synchronous>, transform_indices = @transform_1, window_bounds = array<i64: 64, 128>}, {pipeline_mode = #tpu.pipeline_mode<synchronous>, transform_indices = @transform_2, window_bounds = array<i64: 128, 256>}, {pipeline_mode = #tpu.pipeline_mode<synchronous>, transform_indices = @transform_3, window_bounds = array<i64: 256, 512>}, {pipeline_mode = #tpu.pipeline_mode<synchronous>, transform_indices = @transform_4, window_bounds = array<i64: 512, 896>}, {pipeline_mode = #tpu.pipeline_mode<synchronous>, transform_indices = @transform_5, window_bounds = array<i64: 1, 1792>}, {transform_indices = @transform_6, window_bounds = array<i64: 16, 784>}]} {
    %c0 = arith.constant 0 : index
    %c0_0 = arith.constant 0 : index
    %0 = vector.load %arg1[%c0, %c0_0] : memref<16x64xf32, #tpu.memory_space<vmem>>, vector<16x64xf32>
    %1 = arith.truncf %0 : vector<16x64xf32> to vector<16x64xbf16>
    %c0_1 = arith.constant 0 : index
    %c0_2 = arith.constant 0 : index
    %2 = vector.load %arg6[%c0_1, %c0_2] : memref<1x1792xf32, #tpu.memory_space<vmem>>, vector<1x128xf32>
    %c0_3 = arith.constant 0 : index
    %c128 = arith.constant 128 : index
    %3 = vector.load %arg6[%c0_3, %c128] : memref<1x1792xf32, #tpu.memory_space<vmem>>, vector<1x256xf32>
    %c0_4 = arith.constant 0 : index
    %c384 = arith.constant 384 : index
    %4 = vector.load %arg6[%c0_4, %c384] : memref<1x1792xf32, #tpu.memory_space<vmem>>, vector<1x512xf32>
    %c0_5 = arith.constant 0 : index
    %c896 = arith.constant 896 : index
    %5 = vector.load %arg6[%c0_5, %c896] : memref<1x1792xf32, #tpu.memory_space<vmem>>, vector<1x896xf32>
    %c0_6 = arith.constant 0 : index
    %c0_7 = arith.constant 0 : index
    %6 = vector.load %arg2[%c0_6, %c0_7] : memref<64x128xbf16, #tpu.memory_space<vmem>>, vector<64x128xbf16>
    %cst = arith.constant dense<0.000000e+00> : vector<16x128xf32>
    %7 = tpu.matmul %1, %6, %cst {dimension_numbers = #tpu.dot_dimension_numbers<[1], [0], [0], [1], [0, 0, 1, 1], [], []>} : vector<16x64xbf16>, vector<64x128xbf16>, vector<16x128xf32> -> vector<16x128xf32>
    %8 = vector.broadcast %2 : vector<1x128xf32> to vector<16x128xf32>
    %9 = arith.addf %7, %8 : vector<16x128xf32>
    %cst_8 = arith.constant 0.000000e+00 : f32
    %10 = vector.broadcast %cst_8 : f32 to vector<16x128xf32>
    %11 = arith.maximumf %9, %10 : vector<16x128xf32>
    %12 = arith.truncf %11 : vector<16x128xf32> to vector<16x128xbf16>
    %c0_9 = arith.constant 0 : index
    %c0_10 = arith.constant 0 : index
    %13 = vector.load %arg3[%c0_9, %c0_10] : memref<128x256xbf16, #tpu.memory_space<vmem>>, vector<128x256xbf16>
    %cst_11 = arith.constant dense<0.000000e+00> : vector<16x256xf32>
    %14 = tpu.matmul %12, %13, %cst_11 {dimension_numbers = #tpu.dot_dimension_numbers<[1], [0], [0], [1], [0, 0, 1, 1], [], []>} : vector<16x128xbf16>, vector<128x256xbf16>, vector<16x256xf32> -> vector<16x256xf32>
    %15 = vector.broadcast %3 : vector<1x256xf32> to vector<16x256xf32>
    %16 = arith.addf %14, %15 : vector<16x256xf32>
    %cst_12 = arith.constant 0.000000e+00 : f32
    %17 = vector.broadcast %cst_12 : f32 to vector<16x256xf32>
    %18 = arith.maximumf %16, %17 : vector<16x256xf32>
    %19 = arith.truncf %18 : vector<16x256xf32> to vector<16x256xbf16>
    %c0_13 = arith.constant 0 : index
    %c0_14 = arith.constant 0 : index
    %20 = vector.load %arg4[%c0_13, %c0_14] : memref<256x512xbf16, #tpu.memory_space<vmem>>, vector<256x512xbf16>
    %cst_15 = arith.constant dense<0.000000e+00> : vector<16x512xf32>
    %21 = tpu.matmul %19, %20, %cst_15 {dimension_numbers = #tpu.dot_dimension_numbers<[1], [0], [0], [1], [0, 0, 1, 1], [], []>} : vector<16x256xbf16>, vector<256x512xbf16>, vector<16x512xf32> -> vector<16x512xf32>
    %22 = vector.broadcast %4 : vector<1x512xf32> to vector<16x512xf32>
    %23 = arith.addf %21, %22 : vector<16x512xf32>
    %cst_16 = arith.constant 0.000000e+00 : f32
    %24 = vector.broadcast %cst_16 : f32 to vector<16x512xf32>
    %25 = arith.maximumf %23, %24 : vector<16x512xf32>
    %26 = arith.truncf %25 : vector<16x512xf32> to vector<16x512xbf16>
    %c0_17 = arith.constant 0 : index
    %c0_18 = arith.constant 0 : index
    %27 = vector.load %arg5[%c0_17, %c0_18] : memref<512x896xbf16, #tpu.memory_space<vmem>>, vector<512x896xbf16>
    %cst_19 = arith.constant dense<0.000000e+00> : vector<16x896xf32>
    %28 = tpu.matmul %26, %27, %cst_19 {dimension_numbers = #tpu.dot_dimension_numbers<[1], [0], [0], [1], [0, 0, 1, 1], [], []>} : vector<16x512xbf16>, vector<512x896xbf16>, vector<16x896xf32> -> vector<16x896xf32>
    %29 = vector.broadcast %5 : vector<1x896xf32> to vector<16x896xf32>
    %30 = arith.addf %28, %29 : vector<16x896xf32>
    %31 = vector.extract_strided_slice %30 {offsets = [0, 0], sizes = [16, 784], strides = [1, 1]} : vector<16x896xf32> to vector<16x784xf32>
    %32 = arith.negf %31 : vector<16x784xf32>
    %33 = math.exp %32 : vector<16x784xf32>
    %cst_20 = arith.constant 1.000000e+00 : f32
    %34 = vector.broadcast %cst_20 : f32 to vector<16x784xf32>
    %35 = arith.addf %34, %33 : vector<16x784xf32>
    %36 = arith.divf %34, %35 : vector<16x784xf32>
    %c0_21 = arith.constant 0 : index
    %c0_22 = arith.constant 0 : index
    %37 = vector.load %arg7[%c0_21, %c0_22] : memref<16x784xf32, #tpu.memory_space<vmem>>, vector<16x784xf32>
    tpu.vector_store %arg7[%c0_21, %c0_22], %36 {strides = array<i32>} : memref<16x784xf32, #tpu.memory_space<vmem>>, vector<16x784xf32>,
    return
  }
  func.func @transform_0(%arg0: i32) -> (i32, i32) {
    %c0_i32 = arith.constant 0 : i32
    %c0_i32_0 = arith.constant 0 : i32
    return %arg0, %c0_i32 : i32, i32
  }
  func.func @transform_1(%arg0: i32) -> (i32, i32) {
    %c0_i32 = arith.constant 0 : i32
    %c0_i32_0 = arith.constant 0 : i32
    %c0_i32_1 = arith.constant 0 : i32
    return %c0_i32, %c0_i32_0 : i32, i32
  }
  func.func @transform_2(%arg0: i32) -> (i32, i32) {
    %c0_i32 = arith.constant 0 : i32
    %c0_i32_0 = arith.constant 0 : i32
    %c0_i32_1 = arith.constant 0 : i32
    return %c0_i32, %c0_i32_0 : i32, i32
  }
  func.func @transform_3(%arg0: i32) -> (i32, i32) {
    %c0_i32 = arith.constant 0 : i32
    %c0_i32_0 = arith.constant 0 : i32
    %c0_i32_1 = arith.constant 0 : i32
    return %c0_i32, %c0_i32_0 : i32, i32
  }
  func.func @transform_4(%arg0: i32) -> (i32, i32) {
    %c0_i32 = arith.constant 0 : i32
    %c0_i32_0 = arith.constant 0 : i32
    %c0_i32_1 = arith.constant 0 : i32
    return %c0_i32, %c0_i32_0 : i32, i32
  }
  func.func @transform_5(%arg0: i32) -> (i32, i32) {
    %c0_i32 = arith.constant 0 : i32
    %c0_i32_0 = arith.constant 0 : i32
    %c0_i32_1 = arith.constant 0 : i32
    return %c0_i32, %c0_i32_0 : i32, i32
  }
  func.func @transform_6(%arg0: i32) -> (i32, i32) {
    %c0_i32 = arith.constant 0 : i32
    %c0_i32_0 = arith.constant 0 : i32
    return %arg0, %c0_i32 : i32, i32
  }
}

</mosaic_0001>

<llo_original>
// kernel: decoder_forward.1
$region0: #{decoder_forward.1}
  #allocation0 [shape = 'u32[]', space=smem, size = 0x4, offset = 0x4, fixed_abs, tag = 'smem constant byte address 0x4 - core index']
  #allocation1 [shape = 'u32[144,128]{1,0:T(1,128)}', space=vmem, size = 0x12000, scoped, tag = 'internal scratch']
  %s0 = inlined_call_operand.vmem [shape: f32[16,64], index: 0, kind: input, shape index: {}]
  %s1 = inlined_call_operand.hbm [shape: bf16[64,128], index: 1, kind: input, shape index: {}]
  %s2 = inlined_call_operand.hbm [shape: bf16[128,256], index: 2, kind: input, shape index: {}]
  %s3 = inlined_call_operand.hbm [shape: bf16[256,512], index: 3, kind: input, shape index: {}]
  %s4 = inlined_call_operand.hbm [shape: bf16[512,896], index: 4, kind: input, shape index: {}]
  %s5 = inlined_call_operand.vmem [shape: f32[1,1792], index: 5, kind: input, shape index: {}]
  %s6 = inlined_call_operand.vmem [shape: f32[16,784], index: 6, kind: output, shape index: {}]
  %s7 = sld [smem:[#allocation0]]
  $region50: #{decoder_forward.1} parent=0
    _
  %s9 = ssub.s32 1, %s7
  %s10 = scalar_select 0, %s9, %s7
  $region1: #{decoder_forward.1} parent=0
    #allocation2 [shape = 'u8[16384]{0}', space=vmem, size = 0x4000, scoped, tag = 'input window, operand 1, single buffered']
    #allocation3 [shape = 's32[1]{0}', space=sflag, size = 0x4, scoped, tag = 'scoped memory for decoder_forward.1']
    #allocation4 [shape = 'u8[65536]{0}', space=vmem, size = 0x10000, scoped, tag = 'input window, operand 2, single buffered']
    #allocation5 [shape = 's32[1]{0}', space=sflag, size = 0x4, scoped, tag = 'scoped memory for decoder_forward.1']
    #allocation6 [shape = 'u8[262144]{0}', space=vmem, size = 0x40000, scoped, tag = 'input window, operand 3, single buffered']
    #allocation7 [shape = 'u8[917504]{0}', space=vmem, size = 0xe0000, scoped, tag = 'input window, operand 4, single buffered']
    #allocation8 [shape = 's32[1]{0}', space=sflag, size = 0x4, scoped, tag = 'scoped memory for decoder_forward.1']
    %11 = vsyncpa [#allocation3], 0
    %12 = vsyncpa [#allocation5], 0
    %13 = vsyncpa [#allocation8], 0
    // Predicated region
    $region2: #{decoder_forward.1} parent=1 // pred_check
      _
    $region3: #{decoder_forward.1} parent=1 // pred_check_branch
      %15 = sbr.rel (0) target = $region5
    $region4: #{decoder_forward.1} parent=1 // pred_region
      _
    $region5: #{decoder_forward.1} parent=1 // pred_fallthru
      _
    // Predicated region
    $region6: #{decoder_forward.1} parent=1 // pred_check
      _
    $region7: #{decoder_forward.1} parent=1 // pred_check_branch
      %17 = sbr.rel (0) target = $region9
    $region8: #{decoder_forward.1} parent=1 // pred_region
      %s19 = ssub.s32 512, 512
      %20 = vsyncadd [#allocation3], %s19
      %s21 = sshll.u32 [#allocation2], 4
      %s22 = int_to_ptr.vmem [resolvable:$true] %s21
      %27 = dma.hbm_to_vmem [thread:$0]  %s1, 512, %s22, [#allocation3], 64, 64, 4
    $region9: #{decoder_forward.1} parent=1 // pred_fallthru
      _
    // Predicated region
    $region10: #{decoder_forward.1} parent=1 // pred_check
      _
    $region11: #{decoder_forward.1} parent=1 // pred_check_branch
      %29 = sbr.rel (0) target = $region13
    $region12: #{decoder_forward.1} parent=1 // pred_region
      %s31 = ssub.s32 2048, 2048
      %32 = vsyncadd [#allocation5], %s31
      %s33 = sshll.u32 [#allocation4], 4
      %s34 = int_to_ptr.vmem [resolvable:$true] %s33
      %39 = dma.hbm_to_vmem [thread:$0]  %s2, 2048, %s34, [#allocation5], 128, 128, 8
    $region13: #{decoder_forward.1} parent=1 // pred_fallthru
      _
    // Predicated region
    $region14: #{decoder_forward.1} parent=1 // pred_check
      _
    $region15: #{decoder_forward.1} parent=1 // pred_check_branch
      %41 = sbr.rel (0) target = $region17
    $region16: #{decoder_forward.1} parent=1 // pred_region
      %s43 = ssub.s32 8192, 8192
      %44 = vsyncadd [#allocation5], %s43
      %s45 = sshll.u32 [#allocation6], 4
      %s46 = int_to_ptr.vmem [resolvable:$true] %s45
      %51 = dma.hbm_to_vmem [thread:$0]  %s3, 8192, %s46, [#allocation5], 256, 256, 16
    $region17: #{decoder_forward.1} parent=1 // pred_fallthru
      _
    // Predicated region
    $region18: #{decoder_forward.1} parent=1 // pred_check
      _
    $region19: #{decoder_forward.1} parent=1 // pred_check_branch
      %53 = sbr.rel (0) target = $region21
    $region20: #{decoder_forward.1} parent=1 // pred_region
      %s55 = ssub.s32 28672, 28672
      %56 = vsyncadd [#allocation8], %s55
      %s57 = sshll.u32 [#allocation7], 4
      %s58 = int_to_ptr.vmem [resolvable:$true] %s57
      %63 = dma.hbm_to_vmem [thread:$0]  %s4, 28672, %s58, [#allocation8], 448, 448, 28
    $region21: #{decoder_forward.1} parent=1 // pred_fallthru
      _
    // Predicated region
    $region22: #{decoder_forward.1} parent=1 // pred_check
      _
    $region23: #{decoder_forward.1} parent=1 // pred_check_branch
      %65 = sbr.rel (0) target = $region25
    $region24: #{decoder_forward.1} parent=1 // pred_region
      _
    $region25: #{decoder_forward.1} parent=1 // pred_fallthru
      _
    // Predicated region
    $region26: #{decoder_forward.1} parent=1 // pred_check
      _
    $region27: #{decoder_forward.1} parent=1 // pred_check_branch
      %67 = sbr.rel (0) target = $region29
    $region28: #{decoder_forward.1} parent=1 // pred_region
      %68 = dma.done [#allocation3], 512
    $region29: #{decoder_forward.1} parent=1 // pred_fallthru
      _
    // Predicated region
    $region30: #{decoder_forward.1} parent=1 // pred_check
      _
    $region31: #{decoder_forward.1} parent=1 // pred_check_branch
      %70 = sbr.rel (0) target = $region33
    $region32: #{decoder_forward.1} parent=1 // pred_region
      %71 = dma.done [#allocation5], 2048
    $region33: #{decoder_forward.1} parent=1 // pred_fallthru
      _
    // Predicated region
    $region34: #{decoder_forward.1} parent=1 // pred_check
      _
    $region35: #{decoder_forward.1} parent=1 // pred_check_branch
      %73 = sbr.rel (0) target = $region37
    $region36: #{decoder_forward.1} parent=1 // pred_region
      %74 = dma.done [#allocation5], 8192
    $region37: #{decoder_forward.1} parent=1 // pred_fallthru
      _
    // Predicated region
    $region38: #{decoder_forward.1} parent=1 // pred_check
      _
    $region39: #{decoder_forward.1} parent=1 // pred_check_branch
      %76 = sbr.rel (0) target = $region41
    $region40: #{decoder_forward.1} parent=1 // pred_region
      %77 = dma.done [#allocation8], 28672
    $region41: #{decoder_forward.1} parent=1 // pred_fallthru
      _
    %v79 = vld [vmem:[%s0] sm:$0xff]
    %v80 = vld [vmem:[%s0 + $0x8] sm:$0xff]
    %v81 = vpack.c.bf16 %v80, %v79
    %v82 = vld [vmem:[%s5] sm:$0x1]
    %v83 = vld [vmem:[%s5 + $0x1] sm:$0x3]
    %v84 = vld [vmem:[%s5 + $0x3] sm:$0xf]
    %v85 = vld [vmem:[%s5 + $0x7] sm:$0xff]
    %v86 = vld [vmem:[#allocation2] sm:$0xf]
    %v87 = vld [vmem:[#allocation2 + $0x4] sm:$0xf]
    %v88 = vld [vmem:[#allocation2 + $0x8] sm:$0xf]
    %v89 = vld [vmem:[#allocation2 + $0xc] sm:$0xf]
    %v90 = vld [vmem:[#allocation2 + $0x10] sm:$0xf]
    %v91 = vld [vmem:[#allocation2 + $0x14] sm:$0xf]
    %v92 = vld [vmem:[#allocation2 + $0x18] sm:$0xf]
    %v93 = vld [vmem:[#allocation2 + $0x1c] sm:$0xf]
    %v95 = vlaneseq
    %v96 = vshrl.u32 %v95, 7
    %v97 = vsub.s32 0, %v96
    %v98 = vrot.slane %v82, %v97
    %v108 = vunpack.c.l.b16 %v86
    %v109 = vunpack.c.l.b16 %v87
    %v110 = vunpack.c.l.b16 %v88
    %v111 = vunpack.c.l.b16 %v89
    %v112 = vunpack.c.l.b16 %v90
    %v113 = vunpack.c.l.b16 %v91
    %v114 = vunpack.c.l.b16 %v92
    %v115 = vunpack.c.l.b16 %v93
    %v116 = vpack.c.b16 %v109, %v108
    %v117 = vpack.c.b16 %v111, %v110
    %v118 = vpack.c.b16 %v113, %v112
    %v119 = vpack.c.b16 %v115, %v114
    %vm124 = vcmask 523264
    %v126 = vsel %vm124, %v81, 0
    %128 = vmatprep.subr.bf16.mxu0 0
    %129 = vmatpush1.bf16.msra.mxu0 0
    %130 = vmatprep.subr.bf16.mxu0 0
    %131 = vmatpush1.bf16.msra.mxu0 0
    %132 = vmatprep.subr.bf16.mxu0 0
    %133 = vmatpush1.bf16.msra.mxu0 0
    %134 = vmatprep.subr.bf16.mxu0 0
    %135 = vmatpush1.bf16.msra.mxu0 0
    %136 = vmatprep.subr.bf16.mxu0 0
    %137 = vmatpush1.bf16.msra.mxu0 %v119
    %138 = vmatprep.subr.bf16.mxu0 0
    %139 = vmatpush1.bf16.msra.mxu0 %v118
    %140 = vmatprep.subr.bf16.mxu0 0
    %141 = vmatpush1.bf16.msra.mxu0 %v117
    %142 = vmatprep.subr.bf16.mxu0 0
    %143 = vmatpush1.bf16.msra.mxu0 %v116
    %144 = vmatprep.subr.bf16.mxu0 0
    %145 = vmatpush2.bf16.msra.mxu0 0
    %146 = vmatprep.subr.bf16.mxu0 0
    %147 = vmatpush2.bf16.msra.mxu0 0
    %148 = vmatprep.subr.bf16.mxu0 0
    %149 = vmatpush2.bf16.msra.mxu0 0
    %150 = vmatprep.subr.bf16.mxu0 0
    %151 = vmatpush2.bf16.msra.mxu0 0
    %152 = vmatprep.subr.bf16.mxu0 0
    %153 = vmatpush2.bf16.msra.mxu0 0
    %154 = vmatprep.subr.bf16.mxu0 0
    %155 = vmatpush2.bf16.msra.mxu0 0
    %156 = vmatprep.subr.bf16.mxu0 0
    %157 = vmatpush2.bf16.msra.mxu0 0
    %158 = vmatprep.subr.bf16.mxu0 0
    %159 = vmatpush2.bf16.msra.mxu0 0
    %160 = vmatprep.mubr.bf16.mxu0 0
    %161 = vmatmul.mubr.bf16.gmra.mxu0 %v126
    %v162 = vpop.f32.mrf.mxu0
    %v163 = vadd.f32 %v98, %v162
    %v164 = vpop.f32.mrf.mxu0
    %v165 = vpop.f32.mrf.mxu0
    %v166 = vadd.f32 %v98, %v165
    %v167 = vpop.f32.mrf.mxu0
    %168 = vdwg.mxu0
    %v169 = vmax.f32 %v163, 0.0
    %v170 = vmax.f32 %v166, 0.0
    %v171 = vpack.c.bf16 %v170, %v169
    %v172 = vld [vmem:[#allocation4] sm:$0xff]
    %v173 = vld [vmem:[#allocation4 + $0x8] sm:$0xff]
    %v174 = vld [vmem:[#allocation4 + $0x10] sm:$0xff]
    %v175 = vld [vmem:[#allocation4 + $0x18] sm:$0xff]
    %v176 = vld [vmem:[#allocation4 + $0x20] sm:$0xff]
    %v177 = vld [vmem:[#allocation4 + $0x28] sm:$0xff]
    %v178 = vld [vmem:[#allocation4 + $0x30] sm:$0xff]
    %v179 = vld [vmem:[#allocation4 + $0x38] sm:$0xff]
    %v180 = vld [vmem:[#allocation4 + $0x40] sm:$0xff]
    %v181 = vld [vmem:[#allocation4 + $0x48] sm:$0xff]
    %v182 = vld [vmem:[#allocation4 + $0x50] sm:$0xff]
    %v183 = vld [vmem:[#allocation4 + $0x58] sm:$0xff]
    %v184 = vld [vmem:[#allocation4 + $0x60] sm:$0xff]
    %v185 = vld [vmem:[#allocation4 + $0x68] sm:$0xff]
    %v186 = vld [vmem:[#allocation4 + $0x70] sm:$0xff]
    %v187 = vld [vmem:[#allocation4 + $0x78] sm:$0xff]
    %v189 = vlaneseq
    %v190 = vshrl.u32 %v189, 7
    %v191 = vsub.s32 0, %v190
    %v192 = vrot.slane %v83, %v191
    %v193 = vlaneseq
    %v194 = vshrl.u32 %v193, 7
    %v195 = vsub.s32 1, %v194
    %v196 = vrot.slane %v83, %v195
    %v215 = vunpack.c.l.b16 %v172
    %v216 = vunpack.c.h.b16 %v172
    %v217 = vunpack.c.l.b16 %v173
    %v218 = vunpack.c.h.b16 %v173
    %v219 = vunpack.c.l.b16 %v174
    %v220 = vunpack.c.h.b16 %v174
    %v221 = vunpack.c.l.b16 %v175
    %v222 = vunpack.c.h.b16 %v175
    %v223 = vunpack.c.l.b16 %v176
    %v224 = vunpack.c.h.b16 %v176
    %v225 = vunpack.c.l.b16 %v177
    %v226 = vunpack.c.h.b16 %v177
    %v227 = vunpack.c.l.b16 %v178
    %v228 = vunpack.c.h.b16 %v178
    %v229 = vunpack.c.l.b16 %v179
    %v230 = vunpack.c.h.b16 %v179
    %v231 = vunpack.c.l.b16 %v180
    %v232 = vunpack.c.h.b16 %v180
    %v233 = vunpack.c.l.b16 %v181
    %v234 = vunpack.c.h.b16 %v181
    %v235 = vunpack.c.l.b16 %v182
    %v236 = vunpack.c.h.b16 %v182
    %v237 = vunpack.c.l.b16 %v183
    %v238 = vunpack.c.h.b16 %v183
    %v239 = vunpack.c.l.b16 %v184
    %v240 = vunpack.c.h.b16 %v184
    %v241 = vunpack.c.l.b16 %v185
    %v242 = vunpack.c.h.b16 %v185
    %v243 = vunpack.c.l.b16 %v186
    %v244 = vunpack.c.h.b16 %v186
    %v245 = vunpack.c.l.b16 %v187
    %v246 = vunpack.c.h.b16 %v187
    %v247 = vpack.c.b16 %v217, %v215
    %v248 = vpack.c.b16 %v218, %v216
    %v249 = vpack.c.b16 %v221, %v219
    %v250 = vpack.c.b16 %v222, %v220
    %v251 = vpack.c.b16 %v225, %v223
    %v252 = vpack.c.b16 %v226, %v224
    %v253 = vpack.c.b16 %v229, %v227
    %v254 = vpack.c.b16 %v230, %v228
    %v255 = vpack.c.b16 %v233, %v231
    %v256 = vpack.c.b16 %v234, %v232
    %v257 = vpack.c.b16 %v237, %v235
    %v258 = vpack.c.b16 %v238, %v236
    %v259 = vpack.c.b16 %v241, %v239
    %v260 = vpack.c.b16 %v242, %v240
    %v261 = vpack.c.b16 %v245, %v243
    %v262 = vpack.c.b16 %v246, %v244
    %279 = vmatprep.subr.bf16.mxu0 %v262
    %280 = vmatpush1.bf16.msra.mxu0 %v261
    %281 = vmatprep.subr.bf16.mxu0 %v260
    %282 = vmatpush1.bf16.msra.mxu0 %v259
    %283 = vmatprep.subr.bf16.mxu0 %v258
    %284 = vmatpush1.bf16.msra.mxu0 %v257
    %285 = vmatprep.subr.bf16.mxu0 %v256
    %286 = vmatpush1.bf16.msra.mxu0 %v255
    %287 = vmatprep.subr.bf16.mxu0 %v254
    %288 = vmatpush1.bf16.msra.mxu0 %v253
    %289 = vmatprep.subr.bf16.mxu0 %v252
    %290 = vmatpush1.bf16.msra.mxu0 %v251
    %291 = vmatprep.subr.bf16.mxu0 %v250
    %292 = vmatpush1.bf16.msra.mxu0 %v249
    %293 = vmatprep.subr.bf16.mxu0 %v248
    %294 = vmatpush1.bf16.msra.mxu0 %v247
    %295 = vmatprep.subr.bf16.mxu0 0
    %296 = vmatpush2.bf16.msra.mxu0 0
    %297 = vmatprep.subr.bf16.mxu0 0
    %298 = vmatpush2.bf16.msra.mxu0 0
    %299 = vmatprep.subr.bf16.mxu0 0
    %300 = vmatpush2.bf16.msra.mxu0 0
    %301 = vmatprep.subr.bf16.mxu0 0
    %302 = vmatpush2.bf16.msra.mxu0 0
    %303 = vmatprep.subr.bf16.mxu0 0
    %304 = vmatpush2.bf16.msra.mxu0 0
    %305 = vmatprep.subr.bf16.mxu0 0
    %306 = vmatpush2.bf16.msra.mxu0 0
    %307 = vmatprep.subr.bf16.mxu0 0
    %308 = vmatpush2.bf16.msra.mxu0 0
    %309 = vmatprep.subr.bf16.mxu0 0
    %310 = vmatpush2.bf16.msra.mxu0 0
    %311 = vmatprep.mubr.bf16.mxu0 0
    %312 = vmatmul.mubr.bf16.gmra.mxu0 %v171
    %v313 = vpop.f32.mrf.mxu0
    %v314 = vadd.f32 %v192, %v313
    %v315 = vpop.f32.mrf.mxu0
    %v316 = vadd.f32 %v196, %v315
    %v317 = vpop.f32.mrf.mxu0
    %v318 = vadd.f32 %v192, %v317
    %v319 = vpop.f32.mrf.mxu0
    %v320 = vadd.f32 %v196, %v319
    %321 = vdwg.mxu0
    %v322 = vmax.f32 %v314, 0.0
    %v323 = vmax.f32 %v316, 0.0
    %v324 = vmax.f32 %v318, 0.0
    %v325 = vmax.f32 %v320, 0.0
    %v326 = vpack.c.bf16 %v324, %v322
    %v327 = vpack.c.bf16 %v325, %v323
    %v328 = vld [vmem:[#allocation6] sm:$0xff]
    %v329 = vld [vmem:[#allocation6 + $0x8] sm:$0xff]
    %v330 = vld [vmem:[#allocation6 + $0x10] sm:$0xff]
    %v331 = vld [vmem:[#allocation6 + $0x18] sm:$0xff]
    %v332 = vld [vmem:[#allocation6 + $0x20] sm:$0xff]
    %v333 = vld [vmem:[#allocation6 + $0x28] sm:$0xff]
    %v334 = vld [vmem:[#allocation6 + $0x30] sm:$0xff]
    %v335 = vld [vmem:[#allocation6 + $0x38] sm:$0xff]
    %v336 = vld [vmem:[#allocation6 + $0x40] sm:$0xff]
    %v337 = vld [vmem:[#allocation6 + $0x48] sm:$0xff]
    %v338 = vld [vmem:[#allocation6 + $0x50] sm:$0xff]
    %v339 = vld [vmem:[#allocation6 + $0x58] sm:$0xff]
    %v340 = vld [vmem:[#allocation6 + $0x60] sm:$0xff]
    %v341 = vld [vmem:[#allocation6 + $0x68] sm:$0xff]
    %v342 = vld [vmem:[#allocation6 + $0x70] sm:$0xff]
    %v343 = vld [vmem:[#allocation6 + $0x78] sm:$0xff]
    %v344 = vld [vmem:[#allocation6 + $0x80] sm:$0xff]
    %v345 = vld [vmem:[#allocation6 + $0x88] sm:$0xff]
    %v346 = vld [vmem:[#allocation6 + $0x90] sm:$0xff]
    %v347 = vld [vmem:[#allocation6 + $0x98] sm:$0xff]
    %v348 = vld [vmem:[#allocation6 + $0xa0] sm:$0xff]
    %v349 = vld [vmem:[#allocation6 + $0xa8] sm:$0xff]
    %v350 = vld [vmem:[#allocation6 + $0xb0] sm:$0xff]
    %v351 = vld [vmem:[#allocation6 + $0xb8] sm:$0xff]
    %v352 = vld [vmem:[#allocation6 + $0xc0] sm:$0xff]
    %v353 = vld [vmem:[#allocation6 + $0xc8] sm:$0xff]
    %v354 = vld [vmem:[#allocation6 + $0xd0] sm:$0xff]
    %v355 = vld [vmem:[#allocation6 + $0xd8] sm:$0xff]
    %v356 = vld [vmem:[#allocation6 + $0xe0] sm:$0xff]
    %v357 = vld [vmem:[#allocation6 + $0xe8] sm:$0xff]
    %v358 = vld [vmem:[#allocation6 + $0xf0] sm:$0xff]
    %v359 = vld [vmem:[#allocation6 + $0xf8] sm:$0xff]
    %v360 = vld [vmem:[#allocation6 + $0x100] sm:$0xff]
    %v361 = vld [vmem:[#allocation6 + $0x108] sm:$0xff]
    %v362 = vld [vmem:[#allocation6 + $0x110] sm:$0xff]
    %v363 = vld [vmem:[#allocation6 + $0x118] sm:$0xff]
    %v364 = vld [vmem:[#allocation6 + $0x120] sm:$0xff]
    %v365 = vld [vmem:[#allocation6 + $0x128] sm:$0xff]
    %v366 = vld [vmem:[#allocation6 + $0x130] sm:$0xff]
    %v367 = vld [vmem:[#allocation6 + $0x138] sm:$0xff]
    %v368 = vld [vmem:[#allocation6 + $0x140] sm:$0xff]
    %v369 = vld [vmem:[#allocation6 + $0x148] sm:$0xff]
    %v370 = vld [vmem:[#allocation6 + $0x150] sm:$0xff]
    %v371 = vld [vmem:[#allocation6 + $0x158] sm:$0xff]
    %v372 = vld [vmem:[#allocation6 + $0x160] sm:$0xff]
    %v373 = vld [vmem:[#allocation6 + $0x168] sm:$0xff]
    %v374 = vld [vmem:[#allocation6 + $0x170] sm:$0xff]
    %v375 = vld [vmem:[#allocation6 + $0x178] sm:$0xff]
    %v376 = vld [vmem:[#allocation6 + $0x180] sm:$0xff]
    %v377 = vld [vmem:[#allocation6 + $0x188] sm:$0xff]
    %v378 = vld [vmem:[#allocation6 + $0x190] sm:$0xff]
    %v379 = vld [vmem:[#allocation6 + $0x198] sm:$0xff]
    %v380 = vld [vmem:[#allocation6 + $0x1a0] sm:$0xff]
    %v381 = vld [vmem:[#allocation6 + $0x1a8] sm:$0xff]
    %v382 = vld [vmem:[#allocation6 + $0x1b0] sm:$0xff]
    %v383 = vld [vmem:[#allocation6 + $0x1b8] sm:$0xff]
    %v384 = vld [vmem:[#allocation6 + $0x1c0] sm:$0xff]
    %v385 = vld [vmem:[#allocation6 + $0x1c8] sm:$0xff]
    %v386 = vld [vmem:[#allocation6 + $0x1d0] sm:$0xff]
    %v387 = vld [vmem:[#allocation6 + $0x1d8] sm:$0xff]
    %v388 = vld [vmem:[#allocation6 + $0x1e0] sm:$0xff]
    %v389 = vld [vmem:[#allocation6 + $0x1e8] sm:$0xff]
    %v390 = vld [vmem:[#allocation6 + $0x1f0] sm:$0xff]
    %v391 = vld [vmem:[#allocation6 + $0x1f8] sm:$0xff]
    %v393 = vlaneseq
    %v394 = vshrl.u32 %v393, 7
    %v395 = vsub.s32 0, %v394
    %v396 = vrot.slane %v84, %v395
    %v397 = vlaneseq
    %v398 = vshrl.u32 %v397, 7
    %v399 = vsub.s32 1, %v398
    %v400 = vrot.slane %v84, %v399
    %v401 = vlaneseq
    %v402 = vshrl.u32 %v401, 7
    %v403 = vsub.s32 2, %v402
    %v404 = vrot.slane %v84, %v403
    %v405 = vlaneseq
    %v406 = vshrl.u32 %v405, 7
    %v407 = vsub.s32 3, %v406
    %v408 = vrot.slane %v84, %v407
    %v477 = vunpack.c.l.b16 %v328
    %v478 = vunpack.c.h.b16 %v328
    %v479 = vunpack.c.l.b16 %v329
    %v480 = vunpack.c.h.b16 %v329
    %v481 = vunpack.c.l.b16 %v330
    %v482 = vunpack.c.h.b16 %v330
    %v483 = vunpack.c.l.b16 %v331
    %v484 = vunpack.c.h.b16 %v331
    %v485 = vunpack.c.l.b16 %v332
    %v486 = vunpack.c.h.b16 %v332
    %v487 = vunpack.c.l.b16 %v333
    %v488 = vunpack.c.h.b16 %v333
    %v489 = vunpack.c.l.b16 %v334
    %v490 = vunpack.c.h.b16 %v334
    %v491 = vunpack.c.l.b16 %v335
    %v492 = vunpack.c.h.b16 %v335
    %v493 = vunpack.c.l.b16 %v336
    %v494 = vunpack.c.h.b16 %v336
    %v495 = vunpack.c.l.b16 %v337
    %v496 = vunpack.c.h.b16 %v337
    %v497 = vunpack.c.l.b16 %v338
    %v498 = vunpack.c.h.b16 %v338
    %v499 = vunpack.c.l.b16 %v339
    %v500 = vunpack.c.h.b16 %v339
    %v501 = vunpack.c.l.b16 %v340
    %v502 = vunpack.c.h.b16 %v340
    %v503 = vunpack.c.l.b16 %v341
    %v504 = vunpack.c.h.b16 %v341
    %v505 = vunpack.c.l.b16 %v342
    %v506 = vunpack.c.h.b16 %v342
    %v507 = vunpack.c.l.b16 %v343
    %v508 = vunpack.c.h.b16 %v343
    %v509 = vunpack.c.l.b16 %v344
    %v510 = vunpack.c.h.b16 %v344
    %v511 = vunpack.c.l.b16 %v345
    %v512 = vunpack.c.h.b16 %v345
    %v513 = vunpack.c.l.b16 %v346
    %v514 = vunpack.c.h.b16 %v346
    %v515 = vunpack.c.l.b16 %v347
    %v516 = vunpack.c.h.b16 %v347
    %v517 = vunpack.c.l.b16 %v348
    %v518 = vunpack.c.h.b16 %v348
    %v519 = vunpack.c.l.b16 %v349
    %v520 = vunpack.c.h.b16 %v349
    %v521 = vunpack.c.l.b16 %v350
    %v522 = vunpack.c.h.b16 %v350
    %v523 = vunpack.c.l.b16 %v351
    %v524 = vunpack.c.h.b16 %v351
    %v525 = vunpack.c.l.b16 %v352
    %v526 = vunpack.c.h.b16 %v352
    %v527 = vunpack.c.l.b16 %v353
    %v528 = vunpack.c.h.b16 %v353
    %v529 = vunpack.c.l.b16 %v354
    %v530 = vunpack.c.h.b16 %v354
    %v531 = vunpack.c.l.b16 %v355
    %v532 = vunpack.c.h.b16 %v355
    %v533 = vunpack.c.l.b16 %v356
    %v534 = vunpack.c.h.b16 %v356
    %v535 = vunpack.c.l.b16 %v357
    %v536 = vunpack.c.h.b16 %v357
    %v537 = vunpack.c.l.b16 %v358
    %v538 = vunpack.c.h.b16 %v358
    %v539 = vunpack.c.l.b16 %v359
    %v540 = vunpack.c.h.b16 %v359
    %v541 = vunpack.c.l.b16 %v360
    %v542 = vunpack.c.h.b16 %v360
    %v543 = vunpack.c.l.b16 %v361
    %v544 = vunpack.c.h.b16 %v361
    %v545 = vunpack.c.l.b16 %v362
    %v546 = vunpack.c.h.b16 %v362
    %v547 = vunpack.c.l.b16 %v363
    %v548 = vunpack.c.h.b16 %v363
    %v549 = vunpack.c.l.b16 %v364
    %v550 = vunpack.c.h.b16 %v364
    %v551 = vunpack.c.l.b16 %v365
    %v552 = vunpack.c.h.b16 %v365
    %v553 = vunpack.c.l.b16 %v366
    %v554 = vunpack.c.h.b16 %v366
    %v555 = vunpack.c.l.b16 %v367
    %v556 = vunpack.c.h.b16 %v367
    %v557 = vunpack.c.l.b16 %v368
    %v558 = vunpack.c.h.b16 %v368
    %v559 = vunpack.c.l.b16 %v369
    %v560 = vunpack.c.h.b16 %v369
    %v561 = vunpack.c.l.b16 %v370
    %v562 = vunpack.c.h.b16 %v370
    %v563 = vunpack.c.l.b16 %v371
    %v564 = vunpack.c.h.b16 %v371
    %v565 = vunpack.c.l.b16 %v372
    %v566 = vunpack.c.h.b16 %v372
    %v567 = vunpack.c.l.b16 %v373
    %v568 = vunpack.c.h.b16 %v373
    %v569 = vunpack.c.l.b16 %v374
    %v570 = vunpack.c.h.b16 %v374
    %v571 = vunpack.c.l.b16 %v375
    %v572 = vunpack.c.h.b16 %v375
    %v573 = vunpack.c.l.b16 %v376
    %v574 = vunpack.c.h.b16 %v376
    %v575 = vunpack.c.l.b16 %v377
    %v576 = vunpack.c.h.b16 %v377
    %v577 = vunpack.c.l.b16 %v378
    %v578 = vunpack.c.h.b16 %v378
    %v579 = vunpack.c.l.b16 %v379
    %v580 = vunpack.c.h.b16 %v379
    %v581 = vunpack.c.l.b16 %v380
    %v582 = vunpack.c.h.b16 %v380
    %v583 = vunpack.c.l.b16 %v381
    %v584 = vunpack.c.h.b16 %v381
    %v585 = vunpack.c.l.b16 %v382
    %v586 = vunpack.c.h.b16 %v382
    %v587 = vunpack.c.l.b16 %v383
    %v588 = vunpack.c.h.b16 %v383
    %v589 = vunpack.c.l.b16 %v384
    %v590 = vunpack.c.h.b16 %v384
    %v591 = vunpack.c.l.b16 %v385
    %v592 = vunpack.c.h.b16 %v385
    %v593 = vunpack.c.l.b16 %v386
    %v594 = vunpack.c.h.b16 %v386
    %v595 = vunpack.c.l.b16 %v387
    %v596 = vunpack.c.h.b16 %v387
    %v597 = vunpack.c.l.b16 %v388
    %v598 = vunpack.c.h.b16 %v388
    %v599 = vunpack.c.l.b16 %v389
    %v600 = vunpack.c.h.b16 %v389
    %v601 = vunpack.c.l.b16 %v390
    %v602 = vunpack.c.h.b16 %v390
    %v603 = vunpack.c.l.b16 %v391
    %v604 = vunpack.c.h.b16 %v391
    %v605 = vpack.c.b16 %v481, %v477
    %v606 = vpack.c.b16 %v482, %v478
    %v607 = vpack.c.b16 %v483, %v479
    %v608 = vpack.c.b16 %v484, %v480
    %v609 = vpack.c.b16 %v489, %v485
    %v610 = vpack.c.b16 %v490, %v486
    %v611 = vpack.c.b16 %v491, %v487
    %v612 = vpack.c.b16 %v492, %v488
    %v613 = vpack.c.b16 %v497, %v493
    %v614 = vpack.c.b16 %v498, %v494
    %v615 = vpack.c.b16 %v499, %v495
    %v616 = vpack.c.b16 %v500, %v496
    %v617 = vpack.c.b16 %v505, %v501
    %v618 = vpack.c.b16 %v506, %v502
    %v619 = vpack.c.b16 %v507, %v503
    %v620 = vpack.c.b16 %v508, %v504
    %v621 = vpack.c.b16 %v513, %v509
    %v622 = vpack.c.b16 %v514, %v510
    %v623 = vpack.c.b16 %v515, %v511
    %v624 = vpack.c.b16 %v516, %v512
    %v625 = vpack.c.b16 %v521, %v517
    %v626 = vpack.c.b16 %v522, %v518
    %v627 = vpack.c.b16 %v523, %v519
    %v628 = vpack.c.b16 %v524, %v520
    %v629 = vpack.c.b16 %v529, %v525
    %v630 = vpack.c.b16 %v530, %v526
    %v631 = vpack.c.b16 %v531, %v527
    %v632 = vpack.c.b16 %v532, %v528
    %v633 = vpack.c.b16 %v537, %v533
    %v634 = vpack.c.b16 %v538, %v534
    %v635 = vpack.c.b16 %v539, %v535
    %v636 = vpack.c.b16 %v540, %v536
    %v637 = vpack.c.b16 %v545, %v541
    %v638 = vpack.c.b16 %v546, %v542
    %v639 = vpack.c.b16 %v547, %v543
    %v640 = vpack.c.b16 %v548, %v544
    %v641 = vpack.c.b16 %v553, %v549
    %v642 = vpack.c.b16 %v554, %v550
    %v643 = vpack.c.b16 %v555, %v551
    %v644 = vpack.c.b16 %v556, %v552
    %v645 = vpack.c.b16 %v561, %v557
    %v646 = vpack.c.b16 %v562, %v558
    %v647 = vpack.c.b16 %v563, %v559
    %v648 = vpack.c.b16 %v564, %v560
    %v649 = vpack.c.b16 %v569, %v565
    %v650 = vpack.c.b16 %v570, %v566
    %v651 = vpack.c.b16 %v571, %v567
    %v652 = vpack.c.b16 %v572, %v568
    %v653 = vpack.c.b16 %v577, %v573
    %v654 = vpack.c.b16 %v578, %v574
    %v655 = vpack.c.b16 %v579, %v575
    %v656 = vpack.c.b16 %v580, %v576
    %v657 = vpack.c.b16 %v585, %v581
    %v658 = vpack.c.b16 %v586, %v582
    %v659 = vpack.c.b16 %v587, %v583
    %v660 = vpack.c.b16 %v588, %v584
    %v661 = vpack.c.b16 %v593, %v589
    %v662 = vpack.c.b16 %v594, %v590
    %v663 = vpack.c.b16 %v595, %v591
    %v664 = vpack.c.b16 %v596, %v592
    %v665 = vpack.c.b16 %v601, %v597
    %v666 = vpack.c.b16 %v602, %v598
    %v667 = vpack.c.b16 %v603, %v599
    %v668 = vpack.c.b16 %v604, %v600
    %733 = vmatprep.subr.bf16.mxu0 %v634
    %734 = vmatpush1.bf16.msra.mxu0 %v633
    %735 = vmatprep.subr.bf16.mxu0 %v630
    %736 = vmatpush1.bf16.msra.mxu0 %v629
    %737 = vmatprep.subr.bf16.mxu0 %v626
    %738 = vmatpush1.bf16.msra.mxu0 %v625
    %739 = vmatprep.subr.bf16.mxu0 %v622
    %740 = vmatpush1.bf16.msra.mxu0 %v621
    %741 = vmatprep.subr.bf16.mxu0 %v618
    %742 = vmatpush1.bf16.msra.mxu0 %v617
    %743 = vmatprep.subr.bf16.mxu0 %v614
    %744 = vmatpush1.bf16.msra.mxu0 %v613
    %745 = vmatprep.subr.bf16.mxu0 %v610
    %746 = vmatpush1.bf16.msra.mxu0 %v609
    %747 = vmatprep.subr.bf16.mxu0 %v606
    %748 = vmatpush1.bf16.msra.mxu0 %v605
    %749 = vmatprep.subr.bf16.mxu0 %v666
    %750 = vmatpush2.bf16.msra.mxu0 %v665
    %751 = vmatprep.subr.bf16.mxu0 %v662
    %752 = vmatpush2.bf16.msra.mxu0 %v661
    %753 = vmatprep.subr.bf16.mxu0 %v658
    %754 = vmatpush2.bf16.msra.mxu0 %v657
    %755 = vmatprep.subr.bf16.mxu0 %v654
    %756 = vmatpush2.bf16.msra.mxu0 %v653
    %757 = vmatprep.subr.bf16.mxu0 %v650
    %758 = vmatpush2.bf16.msra.mxu0 %v649
    %759 = vmatprep.subr.bf16.mxu0 %v646
    %760 = vmatpush2.bf16.msra.mxu0 %v645
    %761 = vmatprep.subr.bf16.mxu0 %v642
    %762 = vmatpush2.bf16.msra.mxu0 %v641
    %763 = vmatprep.subr.bf16.mxu0 %v638
    %764 = vmatpush2.bf16.msra.mxu0 %v637
    %765 = vmatprep.mubr.bf16.mxu0 %v327
    %766 = vmatmul.mubr.bf16.gmra.mxu0 %v326
    %v767 = vpop.f32.mrf.mxu0
    %v768 = vadd.f32 %v396, %v767
    %v769 = vpop.f32.mrf.mxu0
    %v770 = vadd.f32 %v400, %v769
    %v771 = vpop.f32.mrf.mxu0
    %v772 = vadd.f32 %v396, %v771
    %v773 = vpop.f32.mrf.mxu0
    %v774 = vadd.f32 %v400, %v773
    %775 = vdwg.mxu0
    %776 = vmatprep.subr.bf16.mxu0 %v636
    %777 = vmatpush1.bf16.msra.mxu0 %v635
    %778 = vmatprep.subr.bf16.mxu0 %v632
    %779 = vmatpush1.bf16.msra.mxu0 %v631
    %780 = vmatprep.subr.bf16.mxu0 %v628
    %781 = vmatpush1.bf16.msra.mxu0 %v627
    %782 = vmatprep.subr.bf16.mxu0 %v624
    %783 = vmatpush1.bf16.msra.mxu0 %v623
    %784 = vmatprep.subr.bf16.mxu0 %v620
    %785 = vmatpush1.bf16.msra.mxu0 %v619
    %786 = vmatprep.subr.bf16.mxu0 %v616
    %787 = vmatpush1.bf16.msra.mxu0 %v615
    %788 = vmatprep.subr.bf16.mxu0 %v612
    %789 = vmatpush1.bf16.msra.mxu0 %v611
    %790 = vmatprep.subr.bf16.mxu0 %v608
    %791 = vmatpush1.bf16.msra.mxu0 %v607
    %792 = vmatprep.subr.bf16.mxu0 %v668
    %793 = vmatpush2.bf16.msra.mxu0 %v667
    %794 = vmatprep.subr.bf16.mxu0 %v664
    %795 = vmatpush2.bf16.msra.mxu0 %v663
    %796 = vmatprep.subr.bf16.mxu0 %v660
    %797 = vmatpush2.bf16.msra.mxu0 %v659
    %798 = vmatprep.subr.bf16.mxu0 %v656
    %799 = vmatpush2.bf16.msra.mxu0 %v655
    %800 = vmatprep.subr.bf16.mxu0 %v652
    %801 = vmatpush2.bf16.msra.mxu0 %v651
    %802 = vmatprep.subr.bf16.mxu0 %v648
    %803 = vmatpush2.bf16.msra.mxu0 %v647
    %804 = vmatprep.subr.bf16.mxu0 %v644
    %805 = vmatpush2.bf16.msra.mxu0 %v643
    %806 = vmatprep.subr.bf16.mxu0 %v640
    %807 = vmatpush2.bf16.msra.mxu0 %v639
    %808 = vmatprep.mubr.bf16.mxu0 %v327
    %809 = vmatmul.mubr.bf16.gmra.mxu0 %v326
    %v810 = vpop.f32.mrf.mxu0
    %v811 = vadd.f32 %v404, %v810
    %v812 = vpop.f32.mrf.mxu0
    %v813 = vadd.f32 %v408, %v812
    %v814 = vpop.f32.mrf.mxu0
    %v815 = vadd.f32 %v404, %v814
    %v816 = vpop.f32.mrf.mxu0
    %v817 = vadd.f32 %v408, %v816
    %818 = vdwg.mxu0
    %v819 = vmax.f32 %v768, 0.0
    %v820 = vmax.f32 %v770, 0.0
    %v821 = vmax.f32 %v811, 0.0
    %v822 = vmax.f32 %v813, 0.0
    %v823 = vmax.f32 %v772, 0.0
    %v824 = vmax.f32 %v774, 0.0
    %v825 = vmax.f32 %v815, 0.0
    %v826 = vmax.f32 %v817, 0.0
    %v827 = vpack.c.bf16 %v823, %v819
    %v828 = vpack.c.bf16 %v824, %v820
    %v829 = vpack.c.bf16 %v825, %v821
    %v830 = vpack.c.bf16 %v826, %v822
    %v831 = vld [vmem:[#allocation7] sm:$0xff]
    %v832 = vld [vmem:[#allocation7 + $0x8] sm:$0xff]
    %v833 = vld [vmem:[#allocation7 + $0x10] sm:$0xff]
    %v834 = vld [vmem:[#allocation7 + $0x18] sm:$0xf]
    %v835 = vld [vmem:[#allocation7 + $0x1c] sm:$0xff]
    %v836 = vld [vmem:[#allocation7 + $0x24] sm:$0xff]
    %v837 = vld [vmem:[#allocation7 + $0x2c] sm:$0xff]
    %v838 = vld [vmem:[#allocation7 + $0x34] sm:$0xf]
    %v839 = vld [vmem:[#allocation7 + $0x38] sm:$0xff]
    %v840 = vld [vmem:[#allocation7 + $0x40] sm:$0xff]
    %v841 = vld [vmem:[#allocation7 + $0x48] sm:$0xff]
    %v842 = vld [vmem:[#allocation7 + $0x50] sm:$0xf]
    %v843 = vld [vmem:[#allocation7 + $0x54] sm:$0xff]
    %v844 = vld [vmem:[#allocation7 + $0x5c] sm:$0xff]
    %v845 = vld [vmem:[#allocation7 + $0x64] sm:$0xff]
    %v846 = vld [vmem:[#allocation7 + $0x6c] sm:$0xf]
    %v847 = vld [vmem:[#allocation7 + $0x70] sm:$0xff]
    %v848 = vld [vmem:[#allocation7 + $0x78] sm:$0xff]
    %v849 = vld [vmem:[#allocation7 + $0x80] sm:$0xff]
    %v850 = vld [vmem:[#allocation7 + $0x88] sm:$0xf]
    %v851 = vld [vmem:[#allocation7 + $0x8c] sm:$0xff]
    %v852 = vld [vmem:[#allocation7 + $0x94] sm:$0xff]
    %v853 = vld [vmem:[#allocation7 + $0x9c] sm:$0xff]
    %v854 = vld [vmem:[#allocation7 + $0xa4] sm:$0xf]
    %v855 = vld [vmem:[#allocation7 + $0xa8] sm:$0xff]
    %v856 = vld [vmem:[#allocation7 + $0xb0] sm:$0xff]
    %v857 = vld [vmem:[#allocation7 + $0xb8] sm:$0xff]
    %v858 = vld [vmem:[#allocation7 + $0xc0] sm:$0xf]
    %v859 = vld [vmem:[#allocation7 + $0xc4] sm:$0xff]
    %v860 = vld [vmem:[#allocation7 + $0xcc] sm:$0xff]
    %v861 = vld [vmem:[#allocation7 + $0xd4] sm:$0xff]
    %v862 = vld [vmem:[#allocation7 + $0xdc] sm:$0xf]
    %v863 = vld [vmem:[#allocation7 + $0xe0] sm:$0xff]
    %v864 = vld [vmem:[#allocation7 + $0xe8] sm:$0xff]
    %v865 = vld [vmem:[#allocation7 + $0xf0] sm:$0xff]
    %v866 = vld [vmem:[#allocation7 + $0xf8] sm:$0xf]
    %v867 = vld [vmem:[#allocation7 + $0xfc] sm:$0xff]
    %v868 = vld [vmem:[#allocation7 + $0x104] sm:$0xff]
    %v869 = vld [vmem:[#allocation7 + $0x10c] sm:$0xff]
    %v870 = vld [vmem:[#allocation7 + $0x114] sm:$0xf]
    %v871 = vld [vmem:[#allocation7 + $0x118] sm:$0xff]
    %v872 = vld [vmem:[#allocation7 + $0x120] sm:$0xff]
    %v873 = vld [vmem:[#allocation7 + $0x128] sm:$0xff]
    %v874 = vld [vmem:[#allocation7 + $0x130] sm:$0xf]
    %v875 = vld [vmem:[#allocation7 + $0x134] sm:$0xff]
    %v876 = vld [vmem:[#allocation7 + $0x13c] sm:$0xff]
    %v877 = vld [vmem:[#allocation7 + $0x144] sm:$0xff]
    %v878 = vld [vmem:[#allocation7 + $0x14c] sm:$0xf]
    %v879 = vld [vmem:[#allocation7 + $0x150] sm:$0xff]
    %v880 = vld [vmem:[#allocation7 + $0x158] sm:$0xff]
    %v881 = vld [vmem:[#allocation7 + $0x160] sm:$0xff]
    %v882 = vld [vmem:[#allocation7 + $0x168] sm:$0xf]
    %v883 = vld [vmem:[#allocation7 + $0x16c] sm:$0xff]
    %v884 = vld [vmem:[#allocation7 + $0x174] sm:$0xff]
    %v885 = vld [vmem:[#allocation7 + $0x17c] sm:$0xff]
    %v886 = vld [vmem:[#allocation7 + $0x184] sm:$0xf]
    %v887 = vld [vmem:[#allocation7 + $0x188] sm:$0xff]
    %v888 = vld [vmem:[#allocation7 + $0x190] sm:$0xff]
    %v889 = vld [vmem:[#allocation7 + $0x198] sm:$0xff]
    %v890 = vld [vmem:[#allocation7 + $0x1a0] sm:$0xf]
    %v891 = vld [vmem:[#allocation7 + $0x1a4] sm:$0xff]
    %v892 = vld [vmem:[#allocation7 + $0x1ac] sm:$0xff]
    %v893 = vld [vmem:[#allocation7 + $0x1b4] sm:$0xff]
    %v894 = vld [vmem:[#allocation7 + $0x1bc] sm:$0xf]
    %v895 = vld [vmem:[#allocation7 + $0x1c0] sm:$0xff]
    %v896 = vld [vmem:[#allocation7 + $0x1c8] sm:$0xff]
    %v897 = vld [vmem:[#allocation7 + $0x1d0] sm:$0xff]
    %v898 = vld [vmem:[#allocation7 + $0x1d8] sm:$0xf]
    %v899 = vld [vmem:[#allocation7 + $0x1dc] sm:$0xff]
    %v900 = vld [vmem:[#allocation7 + $0x1e4] sm:$0xff]
    %v901 = vld [vmem:[#allocation7 + $0x1ec] sm:$0xff]
    %v902 = vld [vmem:[#allocation7 + $0x1f4] sm:$0xf]
    %v903 = vld [vmem:[#allocation7 + $0x1f8] sm:$0xff]
    %v904 = vld [vmem:[#allocation7 + $0x200] sm:$0xff]
    %v905 = vld [vmem:[#allocation7 + $0x208] sm:$0xff]
    %v906 = vld [vmem:[#allocation7 + $0x210] sm:$0xf]
    %v907 = vld [vmem:[#allocation7 + $0x214] sm:$0xff]
    %v908 = vld [vmem:[#allocation7 + $0x21c] sm:$0xff]
    %v909 = vld [vmem:[#allocation7 + $0x224] sm:$0xff]
    %v910 = vld [vmem:[#allocation7 + $0x22c] sm:$0xf]
    %v911 = vld [vmem:[#allocation7 + $0x230] sm:$0xff]
    %v912 = vld [vmem:[#allocation7 + $0x238] sm:$0xff]
    %v913 = vld [vmem:[#allocation7 + $0x240] sm:$0xff]
    %v914 = vld [vmem:[#allocation7 + $0x248] sm:$0xf]
    %v915 = vld [vmem:[#allocation7 + $0x24c] sm:$0xff]
    %v916 = vld [vmem:[#allocation7 + $0x254] sm:$0xff]
    %v917 = vld [vmem:[#allocation7 + $0x25c] sm:$0xff]
    %v918 = vld [vmem:[#allocation7 + $0x264] sm:$0xf]
    %v919 = vld [vmem:[#allocation7 + $0x268] sm:$0xff]
    %v920 = vld [vmem:[#allocation7 + $0x270] sm:$0xff]
    %v921 = vld [vmem:[#allocation7 + $0x278] sm:$0xff]
    %v922 = vld [vmem:[#allocation7 + $0x280] sm:$0xf]
    %v923 = vld [vmem:[#allocation7 + $0x284] sm:$0xff]
    %v924 = vld [vmem:[#allocation7 + $0x28c] sm:$0xff]
    %v925 = vld [vmem:[#allocation7 + $0x294] sm:$0xff]
    %v926 = vld [vmem:[#allocation7 + $0x29c] sm:$0xf]
    %v927 = vld [vmem:[#allocation7 + $0x2a0] sm:$0xff]
    %v928 = vld [vmem:[#allocation7 + $0x2a8] sm:$0xff]
    %v929 = vld [vmem:[#allocation7 + $0x2b0] sm:$0xff]
    %v930 = vld [vmem:[#allocation7 + $0x2b8] sm:$0xf]
    %v931 = vld [vmem:[#allocation7 + $0x2bc] sm:$0xff]
    %v932 = vld [vmem:[#allocation7 + $0x2c4] sm:$0xff]
    %v933 = vld [vmem:[#allocation7 + $0x2cc] sm:$0xff]
    %v934 = vld [vmem:[#allocation7 + $0x2d4] sm:$0xf]
    %v935 = vld [vmem:[#allocation7 + $0x2d8] sm:$0xff]
    %v936 = vld [vmem:[#allocation7 + $0x2e0] sm:$0xff]
    %v937 = vld [vmem:[#allocation7 + $0x2e8] sm:$0xff]
    %v938 = vld [vmem:[#allocation7 + $0x2f0] sm:$0xf]
    %v939 = vld [vmem:[#allocation7 + $0x2f4] sm:$0xff]
    %v940 = vld [vmem:[#allocation7 + $0x2fc] sm:$0xff]
    %v941 = vld [vmem:[#allocation7 + $0x304] sm:$0xff]
    %v942 = vld [vmem:[#allocation7 + $0x30c] sm:$0xf]
    %v943 = vld [vmem:[#allocation7 + $0x310] sm:$0xff]
    %v944 = vld [vmem:[#allocation7 + $0x318] sm:$0xff]
    %v945 = vld [vmem:[#allocation7 + $0x320] sm:$0xff]
    %v946 = vld [vmem:[#allocation7 + $0x328] sm:$0xf]
    %v947 = vld [vmem:[#allocation7 + $0x32c] sm:$0xff]
    %v948 = vld [vmem:[#allocation7 + $0x334] sm:$0xff]
    %v949 = vld [vmem:[#allocation7 + $0x33c] sm:$0xff]
    %v950 = vld [vmem:[#allocation7 + $0x344] sm:$0xf]
    %v951 = vld [vmem:[#allocation7 + $0x348] sm:$0xff]
    %v952 = vld [vmem:[#allocation7 + $0x350] sm:$0xff]
    %v953 = vld [vmem:[#allocation7 + $0x358] sm:$0xff]
    %v954 = vld [vmem:[#allocation7 + $0x360] sm:$0xf]
    %v955 = vld [vmem:[#allocation7 + $0x364] sm:$0xff]
    %v956 = vld [vmem:[#allocation7 + $0x36c] sm:$0xff]
    %v957 = vld [vmem:[#allocation7 + $0x374] sm:$0xff]
    %v958 = vld [vmem:[#allocation7 + $0x37c] sm:$0xf]
    %v959 = vld [vmem:[#allocation7 + $0x380] sm:$0xff]
    %v960 = vld [vmem:[#allocation7 + $0x388] sm:$0xff]
    %v961 = vld [vmem:[#allocation7 + $0x390] sm:$0xff]
    %v962 = vld [vmem:[#allocation7 + $0x398] sm:$0xf]
    %v963 = vld [vmem:[#allocation7 + $0x39c] sm:$0xff]
    %v964 = vld [vmem:[#allocation7 + $0x3a4] sm:$0xff]
    %v965 = vld [vmem:[#allocation7 + $0x3ac] sm:$0xff]
    %v966 = vld [vmem:[#allocation7 + $0x3b4] sm:$0xf]
    %v967 = vld [vmem:[#allocation7 + $0x3b8] sm:$0xff]
    %v968 = vld [vmem:[#allocation7 + $0x3c0] sm:$0xff]
    %v969 = vld [vmem:[#allocation7 + $0x3c8] sm:$0xff]
    %v970 = vld [vmem:[#allocation7 + $0x3d0] sm:$0xf]
    %v971 = vld [vmem:[#allocation7 + $0x3d4] sm:$0xff]
    %v972 = vld [vmem:[#allocation7 + $0x3dc] sm:$0xff]
    %v973 = vld [vmem:[#allocation7 + $0x3e4] sm:$0xff]
    %v974 = vld [vmem:[#allocation7 + $0x3ec] sm:$0xf]
    %v975 = vld [vmem:[#allocation7 + $0x3f0] sm:$0xff]
    %v976 = vld [vmem:[#allocation7 + $0x3f8] sm:$0xff]
    %v977 = vld [vmem:[#allocation7 + $0x400] sm:$0xff]
    %v978 = vld [vmem:[#allocation7 + $0x408] sm:$0xf]
    %v979 = vld [vmem:[#allocation7 + $0x40c] sm:$0xff]
    %v980 = vld [vmem:[#allocation7 + $0x414] sm:$0xff]
    %v981 = vld [vmem:[#allocation7 + $0x41c] sm:$0xff]
    %v982 = vld [vmem:[#allocation7 + $0x424] sm:$0xf]
    %v983 = vld [vmem:[#allocation7 + $0x428] sm:$0xff]
    %v984 = vld [vmem:[#allocation7 + $0x430] sm:$0xff]
    %v985 = vld [vmem:[#allocation7 + $0x438] sm:$0xff]
    %v986 = vld [vmem:[#allocation7 + $0x440] sm:$0xf]
    %v987 = vld [vmem:[#allocation7 + $0x444] sm:$0xff]
    %v988 = vld [vmem:[#allocation7 + $0x44c] sm:$0xff]
    %v989 = vld [vmem:[#allocation7 + $0x454] sm:$0xff]
    %v990 = vld [vmem:[#allocation7 + $0x45c] sm:$0xf]
    %v991 = vld [vmem:[#allocation7 + $0x460] sm:$0xff]
    %v992 = vld [vmem:[#allocation7 + $0x468] sm:$0xff]
    %v993 = vld [vmem:[#allocation7 + $0x470] sm:$0xff]
    %v994 = vld [vmem:[#allocation7 + $0x478] sm:$0xf]
    %v995 = vld [vmem:[#allocation7 + $0x47c] sm:$0xff]
    %v996 = vld [vmem:[#allocation7 + $0x484] sm:$0xff]
    %v997 = vld [vmem:[#allocation7 + $0x48c] sm:$0xff]
    %v998 = vld [vmem:[#allocation7 + $0x494] sm:$0xf]
    %v999 = vld [vmem:[#allocation7 + $0x498] sm:$0xff]
    %v1000 = vld [vmem:[#allocation7 + $0x4a0] sm:$0xff]
    %v1001 = vld [vmem:[#allocation7 + $0x4a8] sm:$0xff]
    %v1002 = vld [vmem:[#allocation7 + $0x4b0] sm:$0xf]
    %v1003 = vld [vmem:[#allocation7 + $0x4b4] sm:$0xff]
    %v1004 = vld [vmem:[#allocation7 + $0x4bc] sm:$0xff]
    %v1005 = vld [vmem:[#allocation7 + $0x4c4] sm:$0xff]
    %v1006 = vld [vmem:[#allocation7 + $0x4cc] sm:$0xf]
    %v1007 = vld [vmem:[#allocation7 + $0x4d0] sm:$0xff]
    %v1008 = vld [vmem:[#allocation7 + $0x4d8] sm:$0xff]
    %v1009 = vld [vmem:[#allocation7 + $0x4e0] sm:$0xff]
    %v1010 = vld [vmem:[#allocation7 + $0x4e8] sm:$0xf]
    %v1011 = vld [vmem:[#allocation7 + $0x4ec] sm:$0xff]
    %v1012 = vld [vmem:[#allocation7 + $0x4f4] sm:$0xff]
    %v1013 = vld [vmem:[#allocation7 + $0x4fc] sm:$0xff]
    %v1014 = vld [vmem:[#allocation7 + $0x504] sm:$0xf]
    %v1015 = vld [vmem:[#allocation7 + $0x508] sm:$0xff]
    %v1016 = vld [vmem:[#allocation7 + $0x510] sm:$0xff]
    %v1017 = vld [vmem:[#allocation7 + $0x518] sm:$0xff]
    %v1018 = vld [vmem:[#allocation7 + $0x520] sm:$0xf]
    %v1019 = vld [vmem:[#allocation7 + $0x524] sm:$0xff]
    %v1020 = vld [vmem:[#allocation7 + $0x52c] sm:$0xff]
    %v1021 = vld [vmem:[#allocation7 + $0x534] sm:$0xff]
    %v1022 = vld [vmem:[#allocation7 + $0x53c] sm:$0xf]
    %v1023 = vld [vmem:[#allocation7 + $0x540] sm:$0xff]
    %v1024 = vld [vmem:[#allocation7 + $0x548] sm:$0xff]
    %v1025 = vld [vmem:[#allocation7 + $0x550] sm:$0xff]
    %v1026 = vld [vmem:[#allocation7 + $0x558] sm:$0xf]
    %v1027 = vld [vmem:[#allocation7 + $0x55c] sm:$0xff]
    %v1028 = vld [vmem:[#allocation7 + $0x564] sm:$0xff]
    %v1029 = vld [vmem:[#allocation7 + $0x56c] sm:$0xff]
    %v1030 = vld [vmem:[#allocation7 + $0x574] sm:$0xf]
    %v1031 = vld [vmem:[#allocation7 + $0x578] sm:$0xff]
    %v1032 = vld [vmem:[#allocation7 + $0x580] sm:$0xff]
    %v1033 = vld [vmem:[#allocation7 + $0x588] sm:$0xff]
    %v1034 = vld [vmem:[#allocation7 + $0x590] sm:$0xf]
    %v1035 = vld [vmem:[#allocation7 + $0x594] sm:$0xff]
    %v1036 = vld [vmem:[#allocation7 + $0x59c] sm:$0xff]
    %v1037 = vld [vmem:[#allocation7 + $0x5a4] sm:$0xff]
    %v1038 = vld [vmem:[#allocation7 + $0x5ac] sm:$0xf]
    %v1039 = vld [vmem:[#allocation7 + $0x5b0] sm:$0xff]
    %v1040 = vld [vmem:[#allocation7 + $0x5b8] sm:$0xff]
    %v1041 = vld [vmem:[#allocation7 + $0x5c0] sm:$0xff]
    %v1042 = vld [vmem:[#allocation7 + $0x5c8] sm:$0xf]
    %v1043 = vld [vmem:[#allocation7 + $0x5cc] sm:$0xff]
    %v1044 = vld [vmem:[#allocation7 + $0x5d4] sm:$0xff]
    %v1045 = vld [vmem:[#allocation7 + $0x5dc] sm:$0xff]
    %v1046 = vld [vmem:[#allocation7 + $0x5e4] sm:$0xf]
    %v1047 = vld [vmem:[#allocation7 + $0x5e8] sm:$0xff]
    %v1048 = vld [vmem:[#allocation7 + $0x5f0] sm:$0xff]
    %v1049 = vld [vmem:[#allocation7 + $0x5f8] sm:$0xff]
    %v1050 = vld [vmem:[#allocation7 + $0x600] sm:$0xf]
    %v1051 = vld [vmem:[#allocation7 + $0x604] sm:$0xff]
    %v1052 = vld [vmem:[#allocation7 + $0x60c] sm:$0xff]
    %v1053 = vld [vmem:[#allocation7 + $0x614] sm:$0xff]
    %v1054 = vld [vmem:[#allocation7 + $0x61c] sm:$0xf]
    %v1055 = vld [vmem:[#allocation7 + $0x620] sm:$0xff]
    %v1056 = vld [vmem:[#allocation7 + $0x628] sm:$0xff]
    %v1057 = vld [vmem:[#allocation7 + $0x630] sm:$0xff]
    %v1058 = vld [vmem:[#allocation7 + $0x638] sm:$0xf]
    %v1059 = vld [vmem:[#allocation7 + $0x63c] sm:$0xff]
    %v1060 = vld [vmem:[#allocation7 + $0x644] sm:$0xff]
    %v1061 = vld [vmem:[#allocation7 + $0x64c] sm:$0xff]
    %v1062 = vld [vmem:[#allocation7 + $0x654] sm:$0xf]
    %v1063 = vld [vmem:[#allocation7 + $0x658] sm:$0xff]
    %v1064 = vld [vmem:[#allocation7 + $0x660] sm:$0xff]
    %v1065 = vld [vmem:[#allocation7 + $0x668] sm:$0xff]
    %v1066 = vld [vmem:[#allocation7 + $0x670] sm:$0xf]
    %v1067 = vld [vmem:[#allocation7 + $0x674] sm:$0xff]
    %v1068 = vld [vmem:[#allocation7 + $0x67c] sm:$0xff]
    %v1069 = vld [vmem:[#allocation7 + $0x684] sm:$0xff]
    %v1070 = vld [vmem:[#allocation7 + $0x68c] sm:$0xf]
    %v1071 = vld [vmem:[#allocation7 + $0x690] sm:$0xff]
    %v1072 = vld [vmem:[#allocation7 + $0x698] sm:$0xff]
    %v1073 = vld [vmem:[#allocation7 + $0x6a0] sm:$0xff]
    %v1074 = vld [vmem:[#allocation7 + $0x6a8] sm:$0xf]
    %v1075 = vld [vmem:[#allocation7 + $0x6ac] sm:$0xff]
    %v1076 = vld [vmem:[#allocation7 + $0x6b4] sm:$0xff]
    %v1077 = vld [vmem:[#allocation7 + $0x6bc] sm:$0xff]
    %v1078 = vld [vmem:[#allocation7 + $0x6c4] sm:$0xf]
    %v1079 = vld [vmem:[#allocation7 + $0x6c8] sm:$0xff]
    %v1080 = vld [vmem:[#allocation7 + $0x6d0] sm:$0xff]
    %v1081 = vld [vmem:[#allocation7 + $0x6d8] sm:$0xff]
    %v1082 = vld [vmem:[#allocation7 + $0x6e0] sm:$0xf]
    %v1083 = vld [vmem:[#allocation7 + $0x6e4] sm:$0xff]
    %v1084 = vld [vmem:[#allocation7 + $0x6ec] sm:$0xff]
    %v1085 = vld [vmem:[#allocation7 + $0x6f4] sm:$0xff]
    %v1086 = vld [vmem:[#allocation7 + $0x6fc] sm:$0xf]
    %v1088 = vlaneseq
    %v1089 = vshrl.u32 %v1088, 7
    %v1090 = vsub.s32 0, %v1089
    %v1091 = vrot.slane %v85, %v1090
    %v1092 = vlaneseq
    %v1093 = vshrl.u32 %v1092, 7
    %v1094 = vsub.s32 1, %v1093
    %v1095 = vrot.slane %v85, %v1094
    %v1096 = vlaneseq
    %v1097 = vshrl.u32 %v1096, 7
    %v1098 = vsub.s32 2, %v1097
    %v1099 = vrot.slane %v85, %v1098
    %v1100 = vlaneseq
    %v1101 = vshrl.u32 %v1100, 7
    %v1102 = vsub.s32 3, %v1101
    %v1103 = vrot.slane %v85, %v1102
    %v1104 = vlaneseq
    %v1105 = vshrl.u32 %v1104, 7
    %v1106 = vsub.s32 4, %v1105
    %v1107 = vrot.slane %v85, %v1106
    %v1108 = vlaneseq
    %v1109 = vshrl.u32 %v1108, 7
    %v1110 = vsub.s32 5, %v1109
    %v1111 = vrot.slane %v85, %v1110
    %v1112 = vlaneseq
    %v1113 = vshrl.u32 %v1112, 7
    %v1114 = vsub.s32 6, %v1113
    %v1115 = vrot.slane %v85, %v1114
    %v1379 = vunpack.c.l.b16 %v831
    %v1380 = vunpack.c.h.b16 %v831
    %v1381 = vunpack.c.l.b16 %v832
    %v1382 = vunpack.c.h.b16 %v832
    %v1383 = vunpack.c.l.b16 %v833
    %v1384 = vunpack.c.h.b16 %v833
    %v1385 = vunpack.c.l.b16 %v834
    %v1386 = vunpack.c.l.b16 %v835
    %v1387 = vunpack.c.h.b16 %v835
    %v1388 = vunpack.c.l.b16 %v836
    %v1389 = vunpack.c.h.b16 %v836
    %v1390 = vunpack.c.l.b16 %v837
    %v1391 = vunpack.c.h.b16 %v837
    %v1392 = vunpack.c.l.b16 %v838
    %v1393 = vunpack.c.l.b16 %v839
    %v1394 = vunpack.c.h.b16 %v839
    %v1395 = vunpack.c.l.b16 %v840
    %v1396 = vunpack.c.h.b16 %v840
    %v1397 = vunpack.c.l.b16 %v841
    %v1398 = vunpack.c.h.b16 %v841
    %v1399 = vunpack.c.l.b16 %v842
    %v1400 = vunpack.c.l.b16 %v843
    %v1401 = vunpack.c.h.b16 %v843
    %v1402 = vunpack.c.l.b16 %v844
    %v1403 = vunpack.c.h.b16 %v844
    %v1404 = vunpack.c.l.b16 %v845
    %v1405 = vunpack.c.h.b16 %v845
    %v1406 = vunpack.c.l.b16 %v846
    %v1407 = vunpack.c.l.b16 %v847
    %v1408 = vunpack.c.h.b16 %v847
    %v1409 = vunpack.c.l.b16 %v848
    %v1410 = vunpack.c.h.b16 %v848
    %v1411 = vunpack.c.l.b16 %v849
    %v1412 = vunpack.c.h.b16 %v849
    %v1413 = vunpack.c.l.b16 %v850
    %v1414 = vunpack.c.l.b16 %v851
    %v1415 = vunpack.c.h.b16 %v851
    %v1416 = vunpack.c.l.b16 %v852
    %v1417 = vunpack.c.h.b16 %v852
    %v1418 = vunpack.c.l.b16 %v853
    %v1419 = vunpack.c.h.b16 %v853
    %v1420 = vunpack.c.l.b16 %v854
    %v1421 = vunpack.c.l.b16 %v855
    %v1422 = vunpack.c.h.b16 %v855
    %v1423 = vunpack.c.l.b16 %v856
    %v1424 = vunpack.c.h.b16 %v856
    %v1425 = vunpack.c.l.b16 %v857
    %v1426 = vunpack.c.h.b16 %v857
    %v1427 = vunpack.c.l.b16 %v858
    %v1428 = vunpack.c.l.b16 %v859
    %v1429 = vunpack.c.h.b16 %v859
    %v1430 = vunpack.c.l.b16 %v860
    %v1431 = vunpack.c.h.b16 %v860
    %v1432 = vunpack.c.l.b16 %v861
    %v1433 = vunpack.c.h.b16 %v861
    %v1434 = vunpack.c.l.b16 %v862
    %v1435 = vunpack.c.l.b16 %v863
    %v1436 = vunpack.c.h.b16 %v863
    %v1437 = vunpack.c.l.b16 %v864
    %v1438 = vunpack.c.h.b16 %v864
    %v1439 = vunpack.c.l.b16 %v865
    %v1440 = vunpack.c.h.b16 %v865
    %v1441 = vunpack.c.l.b16 %v866
    %v1442 = vunpack.c.l.b16 %v867
    %v1443 = vunpack.c.h.b16 %v867
    %v1444 = vunpack.c.l.b16 %v868
    %v1445 = vunpack.c.h.b16 %v868
    %v1446 = vunpack.c.l.b16 %v869
    %v1447 = vunpack.c.h.b16 %v869
    %v1448 = vunpack.c.l.b16 %v870
    %v1449 = vunpack.c.l.b16 %v871
    %v1450 = vunpack.c.h.b16 %v871
    %v1451 = vunpack.c.l.b16 %v872
    %v1452 = vunpack.c.h.b16 %v872
    %v1453 = vunpack.c.l.b16 %v873
    %v1454 = vunpack.c.h.b16 %v873
    %v1455 = vunpack.c.l.b16 %v874
    %v1456 = vunpack.c.l.b16 %v875
    %v1457 = vunpack.c.h.b16 %v875
    %v1458 = vunpack.c.l.b16 %v876
    %v1459 = vunpack.c.h.b16 %v876
    %v1460 = vunpack.c.l.b16 %v877
    %v1461 = vunpack.c.h.b16 %v877
    %v1462 = vunpack.c.l.b16 %v878
    %v1463 = vunpack.c.l.b16 %v879
    %v1464 = vunpack.c.h.b16 %v879
    %v1465 = vunpack.c.l.b16 %v880
    %v1466 = vunpack.c.h.b16 %v880
    %v1467 = vunpack.c.l.b16 %v881
    %v1468 = vunpack.c.h.b16 %v881
    %v1469 = vunpack.c.l.b16 %v882
    %v1470 = vunpack.c.l.b16 %v883
    %v1471 = vunpack.c.h.b16 %v883
    %v1472 = vunpack.c.l.b16 %v884
    %v1473 = vunpack.c.h.b16 %v884
    %v1474 = vunpack.c.l.b16 %v885
    %v1475 = vunpack.c.h.b16 %v885
    %v1476 = vunpack.c.l.b16 %v886
    %v1477 = vunpack.c.l.b16 %v887
    %v1478 = vunpack.c.h.b16 %v887
    %v1479 = vunpack.c.l.b16 %v888
    %v1480 = vunpack.c.h.b16 %v888
    %v1481 = vunpack.c.l.b16 %v889
    %v1482 = vunpack.c.h.b16 %v889
    %v1483 = vunpack.c.l.b16 %v890
    %v1484 = vunpack.c.l.b16 %v891
    %v1485 = vunpack.c.h.b16 %v891
    %v1486 = vunpack.c.l.b16 %v892
    %v1487 = vunpack.c.h.b16 %v892
    %v1488 = vunpack.c.l.b16 %v893
    %v1489 = vunpack.c.h.b16 %v893
    %v1490 = vunpack.c.l.b16 %v894
    %v1491 = vunpack.c.l.b16 %v895
    %v1492 = vunpack.c.h.b16 %v895
    %v1493 = vunpack.c.l.b16 %v896
    %v1494 = vunpack.c.h.b16 %v896
    %v1495 = vunpack.c.l.b16 %v897
    %v1496 = vunpack.c.h.b16 %v897
    %v1497 = vunpack.c.l.b16 %v898
    %v1498 = vunpack.c.l.b16 %v899
    %v1499 = vunpack.c.h.b16 %v899
    %v1500 = vunpack.c.l.b16 %v900
    %v1501 = vunpack.c.h.b16 %v900
    %v1502 = vunpack.c.l.b16 %v901
    %v1503 = vunpack.c.h.b16 %v901
    %v1504 = vunpack.c.l.b16 %v902
    %v1505 = vunpack.c.l.b16 %v903
    %v1506 = vunpack.c.h.b16 %v903
    %v1507 = vunpack.c.l.b16 %v904
    %v1508 = vunpack.c.h.b16 %v904
    %v1509 = vunpack.c.l.b16 %v905
    %v1510 = vunpack.c.h.b16 %v905
    %v1511 = vunpack.c.l.b16 %v906
    %v1512 = vunpack.c.l.b16 %v907
    %v1513 = vunpack.c.h.b16 %v907
    %v1514 = vunpack.c.l.b16 %v908
    %v1515 = vunpack.c.h.b16 %v908
    %v1516 = vunpack.c.l.b16 %v909
    %v1517 = vunpack.c.h.b16 %v909
    %v1518 = vunpack.c.l.b16 %v910
    %v1519 = vunpack.c.l.b16 %v911
    %v1520 = vunpack.c.h.b16 %v911
    %v1521 = vunpack.c.l.b16 %v912
    %v1522 = vunpack.c.h.b16 %v912
    %v1523 = vunpack.c.l.b16 %v913
    %v1524 = vunpack.c.h.b16 %v913
    %v1525 = vunpack.c.l.b16 %v914
    %v1526 = vunpack.c.l.b16 %v915
    %v1527 = vunpack.c.h.b16 %v915
    %v1528 = vunpack.c.l.b16 %v916
    %v1529 = vunpack.c.h.b16 %v916
    %v1530 = vunpack.c.l.b16 %v917
    %v1531 = vunpack.c.h.b16 %v917
    %v1532 = vunpack.c.l.b16 %v918
    %v1533 = vunpack.c.l.b16 %v919
    %v1534 = vunpack.c.h.b16 %v919
    %v1535 = vunpack.c.l.b16 %v920
    %v1536 = vunpack.c.h.b16 %v920
    %v1537 = vunpack.c.l.b16 %v921
    %v1538 = vunpack.c.h.b16 %v921
    %v1539 = vunpack.c.l.b16 %v922
    %v1540 = vunpack.c.l.b16 %v923
    %v1541 = vunpack.c.h.b16 %v923
    %v1542 = vunpack.c.l.b16 %v924
    %v1543 = vunpack.c.h.b16 %v924
    %v1544 = vunpack.c.l.b16 %v925
    %v1545 = vunpack.c.h.b16 %v925
    %v1546 = vunpack.c.l.b16 %v926
    %v1547 = vunpack.c.l.b16 %v927
    %v1548 = vunpack.c.h.b16 %v927
    %v1549 = vunpack.c.l.b16 %v928
    %v1550 = vunpack.c.h.b16 %v928
    %v1551 = vunpack.c.l.b16 %v929
    %v1552 = vunpack.c.h.b16 %v929
    %v1553 = vunpack.c.l.b16 %v930
    %v1554 = vunpack.c.l.b16 %v931
    %v1555 = vunpack.c.h.b16 %v931
    %v1556 = vunpack.c.l.b16 %v932
    %v1557 = vunpack.c.h.b16 %v932
    %v1558 = vunpack.c.l.b16 %v933
    %v1559 = vunpack.c.h.b16 %v933
    %v1560 = vunpack.c.l.b16 %v934
    %v1561 = vunpack.c.l.b16 %v935
    %v1562 = vunpack.c.h.b16 %v935
    %v1563 = vunpack.c.l.b16 %v936
    %v1564 = vunpack.c.h.b16 %v936
    %v1565 = vunpack.c.l.b16 %v937
    %v1566 = vunpack.c.h.b16 %v937
    %v1567 = vunpack.c.l.b16 %v938
    %v1568 = vunpack.c.l.b16 %v939
    %v1569 = vunpack.c.h.b16 %v939
    %v1570 = vunpack.c.l.b16 %v940
    %v1571 = vunpack.c.h.b16 %v940
    %v1572 = vunpack.c.l.b16 %v941
    %v1573 = vunpack.c.h.b16 %v941
    %v1574 = vunpack.c.l.b16 %v942
    %v1575 = vunpack.c.l.b16 %v943
    %v1576 = vunpack.c.h.b16 %v943
    %v1577 = vunpack.c.l.b16 %v944
    %v1578 = vunpack.c.h.b16 %v944
    %v1579 = vunpack.c.l.b16 %v945
    %v1580 = vunpack.c.h.b16 %v945
    %v1581 = vunpack.c.l.b16 %v946
    %v1582 = vunpack.c.l.b16 %v947
    %v1583 = vunpack.c.h.b16 %v947
    %v1584 = vunpack.c.l.b16 %v948
    %v1585 = vunpack.c.h.b16 %v948
    %v1586 = vunpack.c.l.b16 %v949
    %v1587 = vunpack.c.h.b16 %v949
    %v1588 = vunpack.c.l.b16 %v950
    %v1589 = vunpack.c.l.b16 %v951
    %v1590 = vunpack.c.h.b16 %v951
    %v1591 = vunpack.c.l.b16 %v952
    %v1592 = vunpack.c.h.b16 %v952
    %v1593 = vunpack.c.l.b16 %v953
    %v1594 = vunpack.c.h.b16 %v953
    %v1595 = vunpack.c.l.b16 %v954
    %v1596 = vunpack.c.l.b16 %v955
    %v1597 = vunpack.c.h.b16 %v955
    %v1598 = vunpack.c.l.b16 %v956
    %v1599 = vunpack.c.h.b16 %v956
    %v1600 = vunpack.c.l.b16 %v957
    %v1601 = vunpack.c.h.b16 %v957
    %v1602 = vunpack.c.l.b16 %v958
    %v1603 = vunpack.c.l.b16 %v959
    %v1604 = vunpack.c.h.b16 %v959
    %v1605 = vunpack.c.l.b16 %v960
    %v1606 = vunpack.c.h.b16 %v960
    %v1607 = vunpack.c.l.b16 %v961
    %v1608 = vunpack.c.h.b16 %v961
    %v1609 = vunpack.c.l.b16 %v962
    %v1610 = vunpack.c.l.b16 %v963
    %v1611 = vunpack.c.h.b16 %v963
    %v1612 = vunpack.c.l.b16 %v964
    %v1613 = vunpack.c.h.b16 %v964
    %v1614 = vunpack.c.l.b16 %v965
    %v1615 = vunpack.c.h.b16 %v965
    %v1616 = vunpack.c.l.b16 %v966
    %v1617 = vunpack.c.l.b16 %v967
    %v1618 = vunpack.c.h.b16 %v967
    %v1619 = vunpack.c.l.b16 %v968
    %v1620 = vunpack.c.h.b16 %v968
    %v1621 = vunpack.c.l.b16 %v969
    %v1622 = vunpack.c.h.b16 %v969
    %v1623 = vunpack.c.l.b16 %v970
    %v1624 = vunpack.c.l.b16 %v971
    %v1625 = vunpack.c.h.b16 %v971
    %v1626 = vunpack.c.l.b16 %v972
    %v1627 = vunpack.c.h.b16 %v972
    %v1628 = vunpack.c.l.b16 %v973
    %v1629 = vunpack.c.h.b16 %v973
    %v1630 = vunpack.c.l.b16 %v974
    %v1631 = vunpack.c.l.b16 %v975
    %v1632 = vunpack.c.h.b16 %v975
    %v1633 = vunpack.c.l.b16 %v976
    %v1634 = vunpack.c.h.b16 %v976
    %v1635 = vunpack.c.l.b16 %v977
    %v1636 = vunpack.c.h.b16 %v977
    %v1637 = vunpack.c.l.b16 %v978
    %v1638 = vunpack.c.l.b16 %v979
    %v1639 = vunpack.c.h.b16 %v979
    %v1640 = vunpack.c.l.b16 %v980
    %v1641 = vunpack.c.h.b16 %v980
    %v1642 = vunpack.c.l.b16 %v981
    %v1643 = vunpack.c.h.b16 %v981
    %v1644 = vunpack.c.l.b16 %v982
    %v1645 = vunpack.c.l.b16 %v983
    %v1646 = vunpack.c.h.b16 %v983
    %v1647 = vunpack.c.l.b16 %v984
    %v1648 = vunpack.c.h.b16 %v984
    %v1649 = vunpack.c.l.b16 %v985
    %v1650 = vunpack.c.h.b16 %v985
    %v1651 = vunpack.c.l.b16 %v986
    %v1652 = vunpack.c.l.b16 %v987
    %v1653 = vunpack.c.h.b16 %v987
    %v1654 = vunpack.c.l.b16 %v988
    %v1655 = vunpack.c.h.b16 %v988
    %v1656 = vunpack.c.l.b16 %v989
    %v1657 = vunpack.c.h.b16 %v989
    %v1658 = vunpack.c.l.b16 %v990
    %v1659 = vunpack.c.l.b16 %v991
    %v1660 = vunpack.c.h.b16 %v991
    %v1661 = vunpack.c.l.b16 %v992
    %v1662 = vunpack.c.h.b16 %v992
    %v1663 = vunpack.c.l.b16 %v993
    %v1664 = vunpack.c.h.b16 %v993
    %v1665 = vunpack.c.l.b16 %v994
    %v1666 = vunpack.c.l.b16 %v995
    %v1667 = vunpack.c.h.b16 %v995
    %v1668 = vunpack.c.l.b16 %v996
    %v1669 = vunpack.c.h.b16 %v996
    %v1670 = vunpack.c.l.b16 %v997
    %v1671 = vunpack.c.h.b16 %v997
    %v1672 = vunpack.c.l.b16 %v998
    %v1673 = vunpack.c.l.b16 %v999
    %v1674 = vunpack.c.h.b16 %v999
    %v1675 = vunpack.c.l.b16 %v1000
    %v1676 = vunpack.c.h.b16 %v1000
    %v1677 = vunpack.c.l.b16 %v1001
    %v1678 = vunpack.c.h.b16 %v1001
    %v1679 = vunpack.c.l.b16 %v1002
    %v1680 = vunpack.c.l.b16 %v1003
    %v1681 = vunpack.c.h.b16 %v1003
    %v1682 = vunpack.c.l.b16 %v1004
    %v1683 = vunpack.c.h.b16 %v1004
    %v1684 = vunpack.c.l.b16 %v1005
    %v1685 = vunpack.c.h.b16 %v1005
    %v1686 = vunpack.c.l.b16 %v1006
    %v1687 = vunpack.c.l.b16 %v1007
    %v1688 = vunpack.c.h.b16 %v1007
    %v1689 = vunpack.c.l.b16 %v1008
    %v1690 = vunpack.c.h.b16 %v1008
    %v1691 = vunpack.c.l.b16 %v1009
    %v1692 = vunpack.c.h.b16 %v1009
    %v1693 = vunpack.c.l.b16 %v1010
    %v1694 = vunpack.c.l.b16 %v1011
    %v1695 = vunpack.c.h.b16 %v1011
    %v1696 = vunpack.c.l.b16 %v1012
    %v1697 = vunpack.c.h.b16 %v1012
    %v1698 = vunpack.c.l.b16 %v1013
    %v1699 = vunpack.c.h.b16 %v1013
    %v1700 = vunpack.c.l.b16 %v1014
    %v1701 = vunpack.c.l.b16 %v1015
    %v1702 = vunpack.c.h.b16 %v1015
    %v1703 = vunpack.c.l.b16 %v1016
    %v1704 = vunpack.c.h.b16 %v1016
    %v1705 = vunpack.c.l.b16 %v1017
    %v1706 = vunpack.c.h.b16 %v1017
    %v1707 = vunpack.c.l.b16 %v1018
    %v1708 = vunpack.c.l.b16 %v1019
    %v1709 = vunpack.c.h.b16 %v1019
    %v1710 = vunpack.c.l.b16 %v1020
    %v1711 = vunpack.c.h.b16 %v1020
    %v1712 = vunpack.c.l.b16 %v1021
    %v1713 = vunpack.c.h.b16 %v1021
    %v1714 = vunpack.c.l.b16 %v1022
    %v1715 = vunpack.c.l.b16 %v1023
    %v1716 = vunpack.c.h.b16 %v1023
    %v1717 = vunpack.c.l.b16 %v1024
    %v1718 = vunpack.c.h.b16 %v1024
    %v1719 = vunpack.c.l.b16 %v1025
    %v1720 = vunpack.c.h.b16 %v1025
    %v1721 = vunpack.c.l.b16 %v1026
    %v1722 = vunpack.c.l.b16 %v1027
    %v1723 = vunpack.c.h.b16 %v1027
    %v1724 = vunpack.c.l.b16 %v1028
    %v1725 = vunpack.c.h.b16 %v1028
    %v1726 = vunpack.c.l.b16 %v1029
    %v1727 = vunpack.c.h.b16 %v1029
    %v1728 = vunpack.c.l.b16 %v1030
    %v1729 = vunpack.c.l.b16 %v1031
    %v1730 = vunpack.c.h.b16 %v1031
    %v1731 = vunpack.c.l.b16 %v1032
    %v1732 = vunpack.c.h.b16 %v1032
    %v1733 = vunpack.c.l.b16 %v1033
    %v1734 = vunpack.c.h.b16 %v1033
    %v1735 = vunpack.c.l.b16 %v1034
    %v1736 = vunpack.c.l.b16 %v1035
    %v1737 = vunpack.c.h.b16 %v1035
    %v1738 = vunpack.c.l.b16 %v1036
    %v1739 = vunpack.c.h.b16 %v1036
    %v1740 = vunpack.c.l.b16 %v1037
    %v1741 = vunpack.c.h.b16 %v1037
    %v1742 = vunpack.c.l.b16 %v1038
    %v1743 = vunpack.c.l.b16 %v1039
    %v1744 = vunpack.c.h.b16 %v1039
    %v1745 = vunpack.c.l.b16 %v1040
    %v1746 = vunpack.c.h.b16 %v1040
    %v1747 = vunpack.c.l.b16 %v1041
    %v1748 = vunpack.c.h.b16 %v1041
    %v1749 = vunpack.c.l.b16 %v1042
    %v1750 = vunpack.c.l.b16 %v1043
    %v1751 = vunpack.c.h.b16 %v1043
    %v1752 = vunpack.c.l.b16 %v1044
    %v1753 = vunpack.c.h.b16 %v1044
    %v1754 = vunpack.c.l.b16 %v1045
    %v1755 = vunpack.c.h.b16 %v1045
    %v1756 = vunpack.c.l.b16 %v1046
    %v1757 = vunpack.c.l.b16 %v1047
    %v1758 = vunpack.c.h.b16 %v1047
    %v1759 = vunpack.c.l.b16 %v1048
    %v1760 = vunpack.c.h.b16 %v1048
    %v1761 = vunpack.c.l.b16 %v1049
    %v1762 = vunpack.c.h.b16 %v1049
    %v1763 = vunpack.c.l.b16 %v1050
    %v1764 = vunpack.c.l.b16 %v1051
    %v1765 = vunpack.c.h.b16 %v1051
    %v1766 = vunpack.c.l.b16 %v1052
    %v1767 = vunpack.c.h.b16 %v1052
    %v1768 = vunpack.c.l.b16 %v1053
    %v1769 = vunpack.c.h.b16 %v1053
    %v1770 = vunpack.c.l.b16 %v1054
    %v1771 = vunpack.c.l.b16 %v1055
    %v1772 = vunpack.c.h.b16 %v1055
    %v1773 = vunpack.c.l.b16 %v1056
    %v1774 = vunpack.c.h.b16 %v1056
    %v1775 = vunpack.c.l.b16 %v1057
    %v1776 = vunpack.c.h.b16 %v1057
    %v1777 = vunpack.c.l.b16 %v1058
    %v1778 = vunpack.c.l.b16 %v1059
    %v1779 = vunpack.c.h.b16 %v1059
    %v1780 = vunpack.c.l.b16 %v1060
    %v1781 = vunpack.c.h.b16 %v1060
    %v1782 = vunpack.c.l.b16 %v1061
    %v1783 = vunpack.c.h.b16 %v1061
    %v1784 = vunpack.c.l.b16 %v1062
    %v1785 = vunpack.c.l.b16 %v1063
    %v1786 = vunpack.c.h.b16 %v1063
    %v1787 = vunpack.c.l.b16 %v1064
    %v1788 = vunpack.c.h.b16 %v1064
    %v1789 = vunpack.c.l.b16 %v1065
    %v1790 = vunpack.c.h.b16 %v1065
    %v1791 = vunpack.c.l.b16 %v1066
    %v1792 = vunpack.c.l.b16 %v1067
    %v1793 = vunpack.c.h.b16 %v1067
    %v1794 = vunpack.c.l.b16 %v1068
    %v1795 = vunpack.c.h.b16 %v1068
    %v1796 = vunpack.c.l.b16 %v1069
    %v1797 = vunpack.c.h.b16 %v1069
    %v1798 = vunpack.c.l.b16 %v1070
    %v1799 = vunpack.c.l.b16 %v1071
    %v1800 = vunpack.c.h.b16 %v1071
    %v1801 = vunpack.c.l.b16 %v1072
    %v1802 = vunpack.c.h.b16 %v1072
    %v1803 = vunpack.c.l.b16 %v1073
    %v1804 = vunpack.c.h.b16 %v1073
    %v1805 = vunpack.c.l.b16 %v1074
    %v1806 = vunpack.c.l.b16 %v1075
    %v1807 = vunpack.c.h.b16 %v1075
    %v1808 = vunpack.c.l.b16 %v1076
    %v1809 = vunpack.c.h.b16 %v1076
    %v1810 = vunpack.c.l.b16 %v1077
    %v1811 = vunpack.c.h.b16 %v1077
    %v1812 = vunpack.c.l.b16 %v1078
    %v1813 = vunpack.c.l.b16 %v1079
    %v1814 = vunpack.c.h.b16 %v1079
    %v1815 = vunpack.c.l.b16 %v1080
    %v1816 = vunpack.c.h.b16 %v1080
    %v1817 = vunpack.c.l.b16 %v1081
    %v1818 = vunpack.c.h.b16 %v1081
    %v1819 = vunpack.c.l.b16 %v1082
    %v1820 = vunpack.c.l.b16 %v1083
    %v1821 = vunpack.c.h.b16 %v1083
    %v1822 = vunpack.c.l.b16 %v1084
    %v1823 = vunpack.c.h.b16 %v1084
    %v1824 = vunpack.c.l.b16 %v1085
    %v1825 = vunpack.c.h.b16 %v1085
    %v1826 = vunpack.c.l.b16 %v1086
    %v1827 = vpack.c.b16 %v1386, %v1379
    %v1828 = vpack.c.b16 %v1387, %v1380
    %v1829 = vpack.c.b16 %v1388, %v1381
    %v1830 = vpack.c.b16 %v1389, %v1382
    %v1831 = vpack.c.b16 %v1390, %v1383
    %v1832 = vpack.c.b16 %v1391, %v1384
    %v1833 = vpack.c.b16 %v1392, %v1385
    %v1834 = vpack.c.b16 %v1400, %v1393
    %v1835 = vpack.c.b16 %v1401, %v1394
    %v1836 = vpack.c.b16 %v1402, %v1395
    %v1837 = vpack.c.b16 %v1403, %v1396
    %v1838 = vpack.c.b16 %v1404, %v1397
    %v1839 = vpack.c.b16 %v1405, %v1398
    %v1840 = vpack.c.b16 %v1406, %v1399
    %v1841 = vpack.c.b16 %v1414, %v1407
    %v1842 = vpack.c.b16 %v1415, %v1408
    %v1843 = vpack.c.b16 %v1416, %v1409
    %v1844 = vpack.c.b16 %v1417, %v1410
    %v1845 = vpack.c.b16 %v1418, %v1411
    %v1846 = vpack.c.b16 %v1419, %v1412
    %v1847 = vpack.c.b16 %v1420, %v1413
    %v1848 = vpack.c.b16 %v1428, %v1421
    %v1849 = vpack.c.b16 %v1429, %v1422
    %v1850 = vpack.c.b16 %v1430, %v1423
    %v1851 = vpack.c.b16 %v1431, %v1424
    %v1852 = vpack.c.b16 %v1432, %v1425
    %v1853 = vpack.c.b16 %v1433, %v1426
    %v1854 = vpack.c.b16 %v1434, %v1427
    %v1855 = vpack.c.b16 %v1442, %v1435
    %v1856 = vpack.c.b16 %v1443, %v1436
    %v1857 = vpack.c.b16 %v1444, %v1437
    %v1858 = vpack.c.b16 %v1445, %v1438
    %v1859 = vpack.c.b16 %v1446, %v1439
    %v1860 = vpack.c.b16 %v1447, %v1440
    %v1861 = vpack.c.b16 %v1448, %v1441
    %v1862 = vpack.c.b16 %v1456, %v1449
    %v1863 = vpack.c.b16 %v1457, %v1450
    %v1864 = vpack.c.b16 %v1458, %v1451
    %v1865 = vpack.c.b16 %v1459, %v1452
    %v1866 = vpack.c.b16 %v1460, %v1453
    %v1867 = vpack.c.b16 %v1461, %v1454
    %v1868 = vpack.c.b16 %v1462, %v1455
    %v1869 = vpack.c.b16 %v1470, %v1463
    %v1870 = vpack.c.b16 %v1471, %v1464
    %v1871 = vpack.c.b16 %v1472, %v1465
    %v1872 = vpack.c.b16 %v1473, %v1466
    %v1873 = vpack.c.b16 %v1474, %v1467
    %v1874 = vpack.c.b16 %v1475, %v1468
    %v1875 = vpack.c.b16 %v1476, %v1469
    %v1876 = vpack.c.b16 %v1484, %v1477
    %v1877 = vpack.c.b16 %v1485, %v1478
    %v1878 = vpack.c.b16 %v1486, %v1479
    %v1879 = vpack.c.b16 %v1487, %v1480
    %v1880 = vpack.c.b16 %v1488, %v1481
    %v1881 = vpack.c.b16 %v1489, %v1482
    %v1882 = vpack.c.b16 %v1490, %v1483
    %v1883 = vpack.c.b16 %v1498, %v1491
    %v1884 = vpack.c.b16 %v1499, %v1492
    %v1885 = vpack.c.b16 %v1500, %v1493
    %v1886 = vpack.c.b16 %v1501, %v1494
    %v1887 = vpack.c.b16 %v1502, %v1495
    %v1888 = vpack.c.b16 %v1503, %v1496
    %v1889 = vpack.c.b16 %v1504, %v1497
    %v1890 = vpack.c.b16 %v1512, %v1505
    %v1891 = vpack.c.b16 %v1513, %v1506
    %v1892 = vpack.c.b16 %v1514, %v1507
    %v1893 = vpack.c.b16 %v1515, %v1508
    %v1894 = vpack.c.b16 %v1516, %v1509
    %v1895 = vpack.c.b16 %v1517, %v1510
    %v1896 = vpack.c.b16 %v1518, %v1511
    %v1897 = vpack.c.b16 %v1526, %v1519
    %v1898 = vpack.c.b16 %v1527, %v1520
    %v1899 = vpack.c.b16 %v1528, %v1521
    %v1900 = vpack.c.b16 %v1529, %v1522
    %v1901 = vpack.c.b16 %v1530, %v1523
    %v1902 = vpack.c.b16 %v1531, %v1524
    %v1903 = vpack.c.b16 %v1532, %v1525
    %v1904 = vpack.c.b16 %v1540, %v1533
    %v1905 = vpack.c.b16 %v1541, %v1534
    %v1906 = vpack.c.b16 %v1542, %v1535
    %v1907 = vpack.c.b16 %v1543, %v1536
    %v1908 = vpack.c.b16 %v1544, %v1537
    %v1909 = vpack.c.b16 %v1545, %v1538
    %v1910 = vpack.c.b16 %v1546, %v1539
    %v1911 = vpack.c.b16 %v1554, %v1547
    %v1912 = vpack.c.b16 %v1555, %v1548
    %v1913 = vpack.c.b16 %v1556, %v1549
    %v1914 = vpack.c.b16 %v1557, %v1550
    %v1915 = vpack.c.b16 %v1558, %v1551
    %v1916 = vpack.c.b16 %v1559, %v1552
    %v1917 = vpack.c.b16 %v1560, %v1553
    %v1918 = vpack.c.b16 %v1568, %v1561
    %v1919 = vpack.c.b16 %v1569, %v1562
    %v1920 = vpack.c.b16 %v1570, %v1563
    %v1921 = vpack.c.b16 %v1571, %v1564
    %v1922 = vpack.c.b16 %v1572, %v1565
    %v1923 = vpack.c.b16 %v1573, %v1566
    %v1924 = vpack.c.b16 %v1574, %v1567
    %v1925 = vpack.c.b16 %v1582, %v1575
    %v1926 = vpack.c.b16 %v1583, %v1576
    %v1927 = vpack.c.b16 %v1584, %v1577
    %v1928 = vpack.c.b16 %v1585, %v1578
    %v1929 = vpack.c.b16 %v1586, %v1579
    %v1930 = vpack.c.b16 %v1587, %v1580
    %v1931 = vpack.c.b16 %v1588, %v1581
    %v1932 = vpack.c.b16 %v1596, %v1589
    %v1933 = vpack.c.b16 %v1597, %v1590
    %v1934 = vpack.c.b16 %v1598, %v1591
    %v1935 = vpack.c.b16 %v1599, %v1592
    %v1936 = vpack.c.b16 %v1600, %v1593
    %v1937 = vpack.c.b16 %v1601, %v1594
    %v1938 = vpack.c.b16 %v1602, %v1595
    %v1939 = vpack.c.b16 %v1610, %v1603
    %v1940 = vpack.c.b16 %v1611, %v1604
    %v1941 = vpack.c.b16 %v1612, %v1605
    %v1942 = vpack.c.b16 %v1613, %v1606
    %v1943 = vpack.c.b16 %v1614, %v1607
    %v1944 = vpack.c.b16 %v1615, %v1608
    %v1945 = vpack.c.b16 %v1616, %v1609
    %v1946 = vpack.c.b16 %v1624, %v1617
    %v1947 = vpack.c.b16 %v1625, %v1618
    %v1948 = vpack.c.b16 %v1626, %v1619
    %v1949 = vpack.c.b16 %v1627, %v1620
    %v1950 = vpack.c.b16 %v1628, %v1621
    %v1951 = vpack.c.b16 %v1629, %v1622
    %v1952 = vpack.c.b16 %v1630, %v1623
    %v1953 = vpack.c.b16 %v1638, %v1631
    %v1954 = vpack.c.b16 %v1639, %v1632
    %v1955 = vpack.c.b16 %v1640, %v1633
    %v1956 = vpack.c.b16 %v1641, %v1634
    %v1957 = vpack.c.b16 %v1642, %v1635
    %v1958 = vpack.c.b16 %v1643, %v1636
    %v1959 = vpack.c.b16 %v1644, %v1637
    %v1960 = vpack.c.b16 %v1652, %v1645
    %v1961 = vpack.c.b16 %v1653, %v1646
    %v1962 = vpack.c.b16 %v1654, %v1647
    %v1963 = vpack.c.b16 %v1655, %v1648
    %v1964 = vpack.c.b16 %v1656, %v1649
    %v1965 = vpack.c.b16 %v1657, %v1650
    %v1966 = vpack.c.b16 %v1658, %v1651
    %v1967 = vpack.c.b16 %v1666, %v1659
    %v1968 = vpack.c.b16 %v1667, %v1660
    %v1969 = vpack.c.b16 %v1668, %v1661
    %v1970 = vpack.c.b16 %v1669, %v1662
    %v1971 = vpack.c.b16 %v1670, %v1663
    %v1972 = vpack.c.b16 %v1671, %v1664
    %v1973 = vpack.c.b16 %v1672, %v1665
    %v1974 = vpack.c.b16 %v1680, %v1673
    %v1975 = vpack.c.b16 %v1681, %v1674
    %v1976 = vpack.c.b16 %v1682, %v1675
    %v1977 = vpack.c.b16 %v1683, %v1676
    %v1978 = vpack.c.b16 %v1684, %v1677
    %v1979 = vpack.c.b16 %v1685, %v1678
    %v1980 = vpack.c.b16 %v1686, %v1679
    %v1981 = vpack.c.b16 %v1694, %v1687
    %v1982 = vpack.c.b16 %v1695, %v1688
    %v1983 = vpack.c.b16 %v1696, %v1689
    %v1984 = vpack.c.b16 %v1697, %v1690
    %v1985 = vpack.c.b16 %v1698, %v1691
    %v1986 = vpack.c.b16 %v1699, %v1692
    %v1987 = vpack.c.b16 %v1700, %v1693
    %v1988 = vpack.c.b16 %v1708, %v1701
    %v1989 = vpack.c.b16 %v1709, %v1702
    %v1990 = vpack.c.b16 %v1710, %v1703
    %v1991 = vpack.c.b16 %v1711, %v1704
    %v1992 = vpack.c.b16 %v1712, %v1705
    %v1993 = vpack.c.b16 %v1713, %v1706
    %v1994 = vpack.c.b16 %v1714, %v1707
    %v1995 = vpack.c.b16 %v1722, %v1715
    %v1996 = vpack.c.b16 %v1723, %v1716
    %v1997 = vpack.c.b16 %v1724, %v1717
    %v1998 = vpack.c.b16 %v1725, %v1718
    %v1999 = vpack.c.b16 %v1726, %v1719
    %v2000 = vpack.c.b16 %v1727, %v1720
    %v2001 = vpack.c.b16 %v1728, %v1721
    %v2002 = vpack.c.b16 %v1736, %v1729
    %v2003 = vpack.c.b16 %v1737, %v1730
    %v2004 = vpack.c.b16 %v1738, %v1731
    %v2005 = vpack.c.b16 %v1739, %v1732
    %v2006 = vpack.c.b16 %v1740, %v1733
    %v2007 = vpack.c.b16 %v1741, %v1734
    %v2008 = vpack.c.b16 %v1742, %v1735
    %v2009 = vpack.c.b16 %v1750, %v1743
    %v2010 = vpack.c.b16 %v1751, %v1744
    %v2011 = vpack.c.b16 %v1752, %v1745
    %v2012 = vpack.c.b16 %v1753, %v1746
    %v2013 = vpack.c.b16 %v1754, %v1747
    %v2014 = vpack.c.b16 %v1755, %v1748
    %v2015 = vpack.c.b16 %v1756, %v1749
    %v2016 = vpack.c.b16 %v1764, %v1757
    %v2017 = vpack.c.b16 %v1765, %v1758
    %v2018 = vpack.c.b16 %v1766, %v1759
    %v2019 = vpack.c.b16 %v1767, %v1760
    %v2020 = vpack.c.b16 %v1768, %v1761
    %v2021 = vpack.c.b16 %v1769, %v1762
    %v2022 = vpack.c.b16 %v1770, %v1763
    %v2023 = vpack.c.b16 %v1778, %v1771
    %v2024 = vpack.c.b16 %v1779, %v1772
    %v2025 = vpack.c.b16 %v1780, %v1773
    %v2026 = vpack.c.b16 %v1781, %v1774
    %v2027 = vpack.c.b16 %v1782, %v1775
    %v2028 = vpack.c.b16 %v1783, %v1776
    %v2029 = vpack.c.b16 %v1784, %v1777
    %v2030 = vpack.c.b16 %v1792, %v1785
    %v2031 = vpack.c.b16 %v1793, %v1786
    %v2032 = vpack.c.b16 %v1794, %v1787
    %v2033 = vpack.c.b16 %v1795, %v1788
    %v2034 = vpack.c.b16 %v1796, %v1789
    %v2035 = vpack.c.b16 %v1797, %v1790
    %v2036 = vpack.c.b16 %v1798, %v1791
    %v2037 = vpack.c.b16 %v1806, %v1799
    %v2038 = vpack.c.b16 %v1807, %v1800
    %v2039 = vpack.c.b16 %v1808, %v1801
    %v2040 = vpack.c.b16 %v1809, %v1802
    %v2041 = vpack.c.b16 %v1810, %v1803
    %v2042 = vpack.c.b16 %v1811, %v1804
    %v2043 = vpack.c.b16 %v1812, %v1805
    %v2044 = vpack.c.b16 %v1820, %v1813
    %v2045 = vpack.c.b16 %v1821, %v1814
    %v2046 = vpack.c.b16 %v1822, %v1815
    %v2047 = vpack.c.b16 %v1823, %v1816
    %v2048 = vpack.c.b16 %v1824, %v1817
    %v2049 = vpack.c.b16 %v1825, %v1818
    %v2050 = vpack.c.b16 %v1826, %v1819
    %2275 = vmatprep.subr.bf16.mxu0 %v1877
    %2276 = vmatpush1.bf16.msra.mxu0 %v1876
    %2277 = vmatprep.subr.bf16.mxu0 %v1870
    %2278 = vmatpush1.bf16.msra.mxu0 %v1869
    %2279 = vmatprep.subr.bf16.mxu0 %v1863
    %2280 = vmatpush1.bf16.msra.mxu0 %v1862
    %2281 = vmatprep.subr.bf16.mxu0 %v1856
    %2282 = vmatpush1.bf16.msra.mxu0 %v1855
    %2283 = vmatprep.subr.bf16.mxu0 %v1849
    %2284 = vmatpush1.bf16.msra.mxu0 %v1848
    %2285 = vmatprep.subr.bf16.mxu0 %v1842
    %2286 = vmatpush1.bf16.msra.mxu0 %v1841
    %2287 = vmatprep.subr.bf16.mxu0 %v1835
    %2288 = vmatpush1.bf16.msra.mxu0 %v1834
    %2289 = vmatprep.subr.bf16.mxu0 %v1828
    %2290 = vmatpush1.bf16.msra.mxu0 %v1827
    %2291 = vmatprep.subr.bf16.mxu0 %v1933
    %2292 = vmatpush2.bf16.msra.mxu0 %v1932
    %2293 = vmatprep.subr.bf16.mxu0 %v1926
    %2294 = vmatpush2.bf16.msra.mxu0 %v1925
    %2295 = vmatprep.subr.bf16.mxu0 %v1919
    %2296 = vmatpush2.bf16.msra.mxu0 %v1918
    %2297 = vmatprep.subr.bf16.mxu0 %v1912
    %2298 = vmatpush2.bf16.msra.mxu0 %v1911
    %2299 = vmatprep.subr.bf16.mxu0 %v1905
    %2300 = vmatpush2.bf16.msra.mxu0 %v1904
    %2301 = vmatprep.subr.bf16.mxu0 %v1898
    %2302 = vmatpush2.bf16.msra.mxu0 %v1897
    %2303 = vmatprep.subr.bf16.mxu0 %v1891
    %2304 = vmatpush2.bf16.msra.mxu0 %v1890
    %2305 = vmatprep.subr.bf16.mxu0 %v1884
    %2306 = vmatpush2.bf16.msra.mxu0 %v1883
    %2307 = vmatprep.mubr.bf16.mxu0 %v828
    %2308 = vmatmul.mubr.bf16.gmra.mxu0 %v827
    %v2309 = vpop.f32.mrf.mxu0
    %v2310 = vadd.f32 %v1091, %v2309
    %v2311 = vpop.f32.mrf.mxu0
    %v2312 = vadd.f32 %v1095, %v2311
    %v2313 = vpop.f32.mrf.mxu0
    %v2314 = vadd.f32 %v1091, %v2313
    %v2315 = vpop.f32.mrf.mxu0
    %v2316 = vadd.f32 %v1095, %v2315
    %2317 = vdwg.mxu0
    %2318 = vmatprep.subr.bf16.mxu0 %v1989
    %2319 = vmatpush1.bf16.msra.mxu0 %v1988
    %2320 = vmatprep.subr.bf16.mxu0 %v1982
    %2321 = vmatpush1.bf16.msra.mxu0 %v1981
    %2322 = vmatprep.subr.bf16.mxu0 %v1975
    %2323 = vmatpush1.bf16.msra.mxu0 %v1974
    %2324 = vmatprep.subr.bf16.mxu0 %v1968
    %2325 = vmatpush1.bf16.msra.mxu0 %v1967
    %2326 = vmatprep.subr.bf16.mxu0 %v1961
    %2327 = vmatpush1.bf16.msra.mxu0 %v1960
    %2328 = vmatprep.subr.bf16.mxu0 %v1954
    %2329 = vmatpush1.bf16.msra.mxu0 %v1953
    %2330 = vmatprep.subr.bf16.mxu0 %v1947
    %2331 = vmatpush1.bf16.msra.mxu0 %v1946
    %2332 = vmatprep.subr.bf16.mxu0 %v1940
    %2333 = vmatpush1.bf16.msra.mxu0 %v1939
    %2334 = vmatprep.subr.bf16.mxu0 %v2045
    %2335 = vmatpush2.bf16.msra.mxu0 %v2044
    %2336 = vmatprep.subr.bf16.mxu0 %v2038
    %2337 = vmatpush2.bf16.msra.mxu0 %v2037
    %2338 = vmatprep.subr.bf16.mxu0 %v2031
    %2339 = vmatpush2.bf16.msra.mxu0 %v2030
    %2340 = vmatprep.subr.bf16.mxu0 %v2024
    %2341 = vmatpush2.bf16.msra.mxu0 %v2023
    %2342 = vmatprep.subr.bf16.mxu0 %v2017
    %2343 = vmatpush2.bf16.msra.mxu0 %v2016
    %2344 = vmatprep.subr.bf16.mxu0 %v2010
    %2345 = vmatpush2.bf16.msra.mxu0 %v2009
    %2346 = vmatprep.subr.bf16.mxu0 %v2003
    %2347 = vmatpush2.bf16.msra.mxu0 %v2002
    %2348 = vmatprep.subr.bf16.mxu0 %v1996
    %2349 = vmatpush2.bf16.msra.mxu0 %v1995
    %2350 = vmatprep.mubr.bf16.mxu0 %v830
    %2351 = vmatmul.mubr.bf16.gmra.mxu0 %v829
    %v2352 = vpop.f32.mrf.mxu0
    %v2353 = vadd.f32 %v2310, %v2352
    %v2354 = vpop.f32.mrf.mxu0
    %v2355 = vadd.f32 %v2312, %v2354
    %v2356 = vpop.f32.mrf.mxu0
    %v2357 = vadd.f32 %v2314, %v2356
    %v2358 = vpop.f32.mrf.mxu0
    %v2359 = vadd.f32 %v2316, %v2358
    %2360 = vdwg.mxu0
    %2361 = vmatprep.subr.bf16.mxu0 %v1879
    %2362 = vmatpush1.bf16.msra.mxu0 %v1878
    %2363 = vmatprep.subr.bf16.mxu0 %v1872
    %2364 = vmatpush1.bf16.msra.mxu0 %v1871
    %2365 = vmatprep.subr.bf16.mxu0 %v1865
    %2366 = vmatpush1.bf16.msra.mxu0 %v1864
    %2367 = vmatprep.subr.bf16.mxu0 %v1858
    %2368 = vmatpush1.bf16.msra.mxu0 %v1857
    %2369 = vmatprep.subr.bf16.mxu0 %v1851
    %2370 = vmatpush1.bf16.msra.mxu0 %v1850
    %2371 = vmatprep.subr.bf16.mxu0 %v1844
    %2372 = vmatpush1.bf16.msra.mxu0 %v1843
    %2373 = vmatprep.subr.bf16.mxu0 %v1837
    %2374 = vmatpush1.bf16.msra.mxu0 %v1836
    %2375 = vmatprep.subr.bf16.mxu0 %v1830
    %2376 = vmatpush1.bf16.msra.mxu0 %v1829
    %2377 = vmatprep.subr.bf16.mxu0 %v1935
    %2378 = vmatpush2.bf16.msra.mxu0 %v1934
    %2379 = vmatprep.subr.bf16.mxu0 %v1928
    %2380 = vmatpush2.bf16.msra.mxu0 %v1927
    %2381 = vmatprep.subr.bf16.mxu0 %v1921
    %2382 = vmatpush2.bf16.msra.mxu0 %v1920
    %2383 = vmatprep.subr.bf16.mxu0 %v1914
    %2384 = vmatpush2.bf16.msra.mxu0 %v1913
    %2385 = vmatprep.subr.bf16.mxu0 %v1907
    %2386 = vmatpush2.bf16.msra.mxu0 %v1906
    %2387 = vmatprep.subr.bf16.mxu0 %v1900
    %2388 = vmatpush2.bf16.msra.mxu0 %v1899
    %2389 = vmatprep.subr.bf16.mxu0 %v1893
    %2390 = vmatpush2.bf16.msra.mxu0 %v1892
    %2391 = vmatprep.subr.bf16.mxu0 %v1886
    %2392 = vmatpush2.bf16.msra.mxu0 %v1885
    %2393 = vmatprep.mubr.bf16.mxu0 %v828
    %2394 = vmatmul.mubr.bf16.gmra.mxu0 %v827
    %v2395 = vpop.f32.mrf.mxu0
    %v2396 = vadd.f32 %v1099, %v2395
    %v2397 = vpop.f32.mrf.mxu0
    %v2398 = vadd.f32 %v1103, %v2397
    %v2399 = vpop.f32.mrf.mxu0
    %v2400 = vadd.f32 %v1099, %v2399
    %v2401 = vpop.f32.mrf.mxu0
    %v2402 = vadd.f32 %v1103, %v2401
    %2403 = vdwg.mxu0
    %2404 = vmatprep.subr.bf16.mxu0 %v1991
    %2405 = vmatpush1.bf16.msra.mxu0 %v1990
    %2406 = vmatprep.subr.bf16.mxu0 %v1984
    %2407 = vmatpush1.bf16.msra.mxu0 %v1983
    %2408 = vmatprep.subr.bf16.mxu0 %v1977
    %2409 = vmatpush1.bf16.msra.mxu0 %v1976
    %2410 = vmatprep.subr.bf16.mxu0 %v1970
    %2411 = vmatpush1.bf16.msra.mxu0 %v1969
    %2412 = vmatprep.subr.bf16.mxu0 %v1963
    %2413 = vmatpush1.bf16.msra.mxu0 %v1962
    %2414 = vmatprep.subr.bf16.mxu0 %v1956
    %2415 = vmatpush1.bf16.msra.mxu0 %v1955
    %2416 = vmatprep.subr.bf16.mxu0 %v1949
    %2417 = vmatpush1.bf16.msra.mxu0 %v1948
    %2418 = vmatprep.subr.bf16.mxu0 %v1942
    %2419 = vmatpush1.bf16.msra.mxu0 %v1941
    %2420 = vmatprep.subr.bf16.mxu0 %v2047
    %2421 = vmatpush2.bf16.msra.mxu0 %v2046
    %2422 = vmatprep.subr.bf16.mxu0 %v2040
    %2423 = vmatpush2.bf16.msra.mxu0 %v2039
    %2424 = vmatprep.subr.bf16.mxu0 %v2033
    %2425 = vmatpush2.bf16.msra.mxu0 %v2032
    %2426 = vmatprep.subr.bf16.mxu0 %v2026
    %2427 = vmatpush2.bf16.msra.mxu0 %v2025
    %2428 = vmatprep.subr.bf16.mxu0 %v2019
    %2429 = vmatpush2.bf16.msra.mxu0 %v2018
    %2430 = vmatprep.subr.bf16.mxu0 %v2012
    %2431 = vmatpush2.bf16.msra.mxu0 %v2011
    %2432 = vmatprep.subr.bf16.mxu0 %v2005
    %2433 = vmatpush2.bf16.msra.mxu0 %v2004
    %2434 = vmatprep.subr.bf16.mxu0 %v1998
    %2435 = vmatpush2.bf16.msra.mxu0 %v1997
    %2436 = vmatprep.mubr.bf16.mxu0 %v830
    %2437 = vmatmul.mubr.bf16.gmra.mxu0 %v829
    %v2438 = vpop.f32.mrf.mxu0
    %v2439 = vadd.f32 %v2396, %v2438
    %v2440 = vpop.f32.mrf.mxu0
    %v2441 = vadd.f32 %v2398, %v2440
    %v2442 = vpop.f32.mrf.mxu0
    %v2443 = vadd.f32 %v2400, %v2442
    %v2444 = vpop.f32.mrf.mxu0
    %v2445 = vadd.f32 %v2402, %v2444
    %2446 = vdwg.mxu0
    %2447 = vmatprep.subr.bf16.mxu0 %v1881
    %2448 = vmatpush1.bf16.msra.mxu0 %v1880
    %2449 = vmatprep.subr.bf16.mxu0 %v1874
    %2450 = vmatpush1.bf16.msra.mxu0 %v1873
    %2451 = vmatprep.subr.bf16.mxu0 %v1867
    %2452 = vmatpush1.bf16.msra.mxu0 %v1866
    %2453 = vmatprep.subr.bf16.mxu0 %v1860
    %2454 = vmatpush1.bf16.msra.mxu0 %v1859
    %2455 = vmatprep.subr.bf16.mxu0 %v1853
    %2456 = vmatpush1.bf16.msra.mxu0 %v1852
    %2457 = vmatprep.subr.bf16.mxu0 %v1846
    %2458 = vmatpush1.bf16.msra.mxu0 %v1845
    %2459 = vmatprep.subr.bf16.mxu0 %v1839
    %2460 = vmatpush1.bf16.msra.mxu0 %v1838
    %2461 = vmatprep.subr.bf16.mxu0 %v1832
    %2462 = vmatpush1.bf16.msra.mxu0 %v1831
    %2463 = vmatprep.subr.bf16.mxu0 %v1937
    %2464 = vmatpush2.bf16.msra.mxu0 %v1936
    %2465 = vmatprep.subr.bf16.mxu0 %v1930
    %2466 = vmatpush2.bf16.msra.mxu0 %v1929
    %2467 = vmatprep.subr.bf16.mxu0 %v1923
    %2468 = vmatpush2.bf16.msra.mxu0 %v1922
    %2469 = vmatprep.subr.bf16.mxu0 %v1916
    %2470 = vmatpush2.bf16.msra.mxu0 %v1915
    %2471 = vmatprep.subr.bf16.mxu0 %v1909
    %2472 = vmatpush2.bf16.msra.mxu0 %v1908
    %2473 = vmatprep.subr.bf16.mxu0 %v1902
    %2474 = vmatpush2.bf16.msra.mxu0 %v1901
    %2475 = vmatprep.subr.bf16.mxu0 %v1895
    %2476 = vmatpush2.bf16.msra.mxu0 %v1894
    %2477 = vmatprep.subr.bf16.mxu0 %v1888
    %2478 = vmatpush2.bf16.msra.mxu0 %v1887
    %2479 = vmatprep.mubr.bf16.mxu0 %v828
    %2480 = vmatmul.mubr.bf16.gmra.mxu0 %v827
    %v2481 = vpop.f32.mrf.mxu0
    %v2482 = vadd.f32 %v1107, %v2481
    %v2483 = vpop.f32.mrf.mxu0
    %v2484 = vadd.f32 %v1111, %v2483
    %v2485 = vpop.f32.mrf.mxu0
    %v2486 = vadd.f32 %v1107, %v2485
    %v2487 = vpop.f32.mrf.mxu0
    %v2488 = vadd.f32 %v1111, %v2487
    %2489 = vdwg.mxu0
    %2490 = vmatprep.subr.bf16.mxu0 %v1993
    %2491 = vmatpush1.bf16.msra.mxu0 %v1992
    %2492 = vmatprep.subr.bf16.mxu0 %v1986
    %2493 = vmatpush1.bf16.msra.mxu0 %v1985
    %2494 = vmatprep.subr.bf16.mxu0 %v1979
    %2495 = vmatpush1.bf16.msra.mxu0 %v1978
    %2496 = vmatprep.subr.bf16.mxu0 %v1972
    %2497 = vmatpush1.bf16.msra.mxu0 %v1971
    %2498 = vmatprep.subr.bf16.mxu0 %v1965
    %2499 = vmatpush1.bf16.msra.mxu0 %v1964
    %2500 = vmatprep.subr.bf16.mxu0 %v1958
    %2501 = vmatpush1.bf16.msra.mxu0 %v1957
    %2502 = vmatprep.subr.bf16.mxu0 %v1951
    %2503 = vmatpush1.bf16.msra.mxu0 %v1950
    %2504 = vmatprep.subr.bf16.mxu0 %v1944
    %2505 = vmatpush1.bf16.msra.mxu0 %v1943
    %2506 = vmatprep.subr.bf16.mxu0 %v2049
    %2507 = vmatpush2.bf16.msra.mxu0 %v2048
    %2508 = vmatprep.subr.bf16.mxu0 %v2042
    %2509 = vmatpush2.bf16.msra.mxu0 %v2041
    %2510 = vmatprep.subr.bf16.mxu0 %v2035
    %2511 = vmatpush2.bf16.msra.mxu0 %v2034
    %2512 = vmatprep.subr.bf16.mxu0 %v2028
    %2513 = vmatpush2.bf16.msra.mxu0 %v2027
    %2514 = vmatprep.subr.bf16.mxu0 %v2021
    %2515 = vmatpush2.bf16.msra.mxu0 %v2020
    %2516 = vmatprep.subr.bf16.mxu0 %v2014
    %2517 = vmatpush2.bf16.msra.mxu0 %v2013
    %2518 = vmatprep.subr.bf16.mxu0 %v2007
    %2519 = vmatpush2.bf16.msra.mxu0 %v2006
    %2520 = vmatprep.subr.bf16.mxu0 %v2000
    %2521 = vmatpush2.bf16.msra.mxu0 %v1999
    %2522 = vmatprep.mubr.bf16.mxu0 %v830
    %2523 = vmatmul.mubr.bf16.gmra.mxu0 %v829
    %v2524 = vpop.f32.mrf.mxu0
    %v2525 = vadd.f32 %v2482, %v2524
    %v2526 = vpop.f32.mrf.mxu0
    %v2527 = vadd.f32 %v2484, %v2526
    %v2528 = vpop.f32.mrf.mxu0
    %v2529 = vadd.f32 %v2486, %v2528
    %v2530 = vpop.f32.mrf.mxu0
    %v2531 = vadd.f32 %v2488, %v2530
    %2532 = vdwg.mxu0
    %2533 = vmatprep.subr.bf16.mxu0 0
    %2534 = vmatpush1.bf16.msra.mxu0 %v1882
    %2535 = vmatprep.subr.bf16.mxu0 0
    %2536 = vmatpush1.bf16.msra.mxu0 %v1875
    %2537 = vmatprep.subr.bf16.mxu0 0
    %2538 = vmatpush1.bf16.msra.mxu0 %v1868
    %2539 = vmatprep.subr.bf16.mxu0 0
    %2540 = vmatpush1.bf16.msra.mxu0 %v1861
    %2541 = vmatprep.subr.bf16.mxu0 0
    %2542 = vmatpush1.bf16.msra.mxu0 %v1854
    %2543 = vmatprep.subr.bf16.mxu0 0
    %2544 = vmatpush1.bf16.msra.mxu0 %v1847
    %2545 = vmatprep.subr.bf16.mxu0 0
    %2546 = vmatpush1.bf16.msra.mxu0 %v1840
    %2547 = vmatprep.subr.bf16.mxu0 0
    %2548 = vmatpush1.bf16.msra.mxu0 %v1833
    %2549 = vmatprep.subr.bf16.mxu0 0
    %2550 = vmatpush2.bf16.msra.mxu0 %v1938
    %2551 = vmatprep.subr.bf16.mxu0 0
    %2552 = vmatpush2.bf16.msra.mxu0 %v1931
    %2553 = vmatprep.subr.bf16.mxu0 0
    %2554 = vmatpush2.bf16.msra.mxu0 %v1924
    %2555 = vmatprep.subr.bf16.mxu0 0
    %2556 = vmatpush2.bf16.msra.mxu0 %v1917
    %2557 = vmatprep.subr.bf16.mxu0 0
    %2558 = vmatpush2.bf16.msra.mxu0 %v1910
    %2559 = vmatprep.subr.bf16.mxu0 0
    %2560 = vmatpush2.bf16.msra.mxu0 %v1903
    %2561 = vmatprep.subr.bf16.mxu0 0
    %2562 = vmatpush2.bf16.msra.mxu0 %v1896
    %2563 = vmatprep.subr.bf16.mxu0 0
    %2564 = vmatpush2.bf16.msra.mxu0 %v1889
    %2565 = vmatprep.mubr.bf16.mxu0 %v828
    %2566 = vmatmul.mubr.bf16.gmra.mxu0 %v827
    %v2567 = vpop.f32.mrf.mxu0
    %v2568 = vadd.f32 %v1115, %v2567
    %v2569 = vpop.f32.mrf.mxu0
    %v2570 = vpop.f32.mrf.mxu0
    %v2571 = vadd.f32 %v1115, %v2570
    %v2572 = vpop.f32.mrf.mxu0
    %2573 = vdwg.mxu0
    %2574 = vmatprep.subr.bf16.mxu0 0
    %2575 = vmatpush1.bf16.msra.mxu0 %v1994
    %2576 = vmatprep.subr.bf16.mxu0 0
    %2577 = vmatpush1.bf16.msra.mxu0 %v1987
    %2578 = vmatprep.subr.bf16.mxu0 0
    %2579 = vmatpush1.bf16.msra.mxu0 %v1980
    %2580 = vmatprep.subr.bf16.mxu0 0
    %2581 = vmatpush1.bf16.msra.mxu0 %v1973
    %2582 = vmatprep.subr.bf16.mxu0 0
    %2583 = vmatpush1.bf16.msra.mxu0 %v1966
    %2584 = vmatprep.subr.bf16.mxu0 0
    %2585 = vmatpush1.bf16.msra.mxu0 %v1959
    %2586 = vmatprep.subr.bf16.mxu0 0
    %2587 = vmatpush1.bf16.msra.mxu0 %v1952
    %2588 = vmatprep.subr.bf16.mxu0 0
    %2589 = vmatpush1.bf16.msra.mxu0 %v1945
    %2590 = vmatprep.subr.bf16.mxu0 0
    %2591 = vmatpush2.bf16.msra.mxu0 %v2050
    %2592 = vmatprep.subr.bf16.mxu0 0
    %2593 = vmatpush2.bf16.msra.mxu0 %v2043
    %2594 = vmatprep.subr.bf16.mxu0 0
    %2595 = vmatpush2.bf16.msra.mxu0 %v2036
    %2596 = vmatprep.subr.bf16.mxu0 0
    %2597 = vmatpush2.bf16.msra.mxu0 %v2029
    %2598 = vmatprep.subr.bf16.mxu0 0
    %2599 = vmatpush2.bf16.msra.mxu0 %v2022
    %2600 = vmatprep.subr.bf16.mxu0 0
    %2601 = vmatpush2.bf16.msra.mxu0 %v2015
    %2602 = vmatprep.subr.bf16.mxu0 0
    %2603 = vmatpush2.bf16.msra.mxu0 %v2008
    %2604 = vmatprep.subr.bf16.mxu0 0
    %2605 = vmatpush2.bf16.msra.mxu0 %v2001
    %2606 = vmatprep.mubr.bf16.mxu0 %v830
    %2607 = vmatmul.mubr.bf16.gmra.mxu0 %v829
    %v2608 = vpop.f32.mrf.mxu0
    %v2609 = vadd.f32 %v2568, %v2608
    %v2610 = vpop.f32.mrf.mxu0
    %v2611 = vpop.f32.mrf.mxu0
    %v2612 = vadd.f32 %v2571, %v2611
    %v2613 = vpop.f32.mrf.mxu0
    %2614 = vdwg.mxu0
    %v2615 = vxor.u32 %v2353, 2147483648
    %v2616 = vxor.u32 %v2355, 2147483648
    %v2617 = vxor.u32 %v2439, 2147483648
    %v2618 = vxor.u32 %v2441, 2147483648
    %v2619 = vxor.u32 %v2525, 2147483648
    %v2620 = vxor.u32 %v2527, 2147483648
    %v2621 = vxor.u32 %v2609, 2147483648
    %v2622 = vxor.u32 %v2357, 2147483648
    %v2623 = vxor.u32 %v2359, 2147483648
    %v2624 = vxor.u32 %v2443, 2147483648
    %v2625 = vxor.u32 %v2445, 2147483648
    %v2626 = vxor.u32 %v2529, 2147483648
    %v2627 = vxor.u32 %v2531, 2147483648
    %v2628 = vxor.u32 %v2612, 2147483648
    %v2629 = vmul.f32 %v2615, 1.442695
    %v2630 = vpow.pop %v2629
    %v2631 = vmul.f32 %v2616, 1.442695
    %v2632 = vpow.pop %v2631
    %v2633 = vmul.f32 %v2617, 1.442695
    %v2634 = vpow.pop %v2633
    %v2635 = vmul.f32 %v2618, 1.442695
    %v2636 = vpow.pop %v2635
    %v2637 = vmul.f32 %v2619, 1.442695
    %v2638 = vpow.pop %v2637
    %v2639 = vmul.f32 %v2620, 1.442695
    %v2640 = vpow.pop %v2639
    %v2641 = vmul.f32 %v2621, 1.442695
    %v2642 = vpow.pop %v2641
    %v2643 = vmul.f32 %v2622, 1.442695
    %v2644 = vpow.pop %v2643
    %v2645 = vmul.f32 %v2623, 1.442695
    %v2646 = vpow.pop %v2645
    %v2647 = vmul.f32 %v2624, 1.442695
    %v2648 = vpow.pop %v2647
    %v2649 = vmul.f32 %v2625, 1.442695
    %v2650 = vpow.pop %v2649
    %v2651 = vmul.f32 %v2626, 1.442695
    %v2652 = vpow.pop %v2651
    %v2653 = vmul.f32 %v2627, 1.442695
    %v2654 = vpow.pop %v2653
    %v2655 = vmul.f32 %v2628, 1.442695
    %v2656 = vpow.pop %v2655
    %v2657 = vadd.f32 %v2630, 1.0
    %v2658 = vadd.f32 %v2632, 1.0
    %v2659 = vadd.f32 %v2634, 1.0
    %v2660 = vadd.f32 %v2636, 1.0
    %v2661 = vadd.f32 %v2638, 1.0
    %v2662 = vadd.f32 %v2640, 1.0
    %v2663 = vadd.f32 %v2642, 1.0
    %v2664 = vadd.f32 %v2644, 1.0
    %v2665 = vadd.f32 %v2646, 1.0
    %v2666 = vadd.f32 %v2648, 1.0
    %v2667 = vadd.f32 %v2650, 1.0
    %v2668 = vadd.f32 %v2652, 1.0
    %v2669 = vadd.f32 %v2654, 1.0
    %v2670 = vadd.f32 %v2656, 1.0
    %v2671 = vrcp.pop %v2657
    %v2672 = vmul.f32 1.0, %v2671
    %v2673 = vrcp.pop %v2658
    %v2674 = vmul.f32 1.0, %v2673
    %v2675 = vrcp.pop %v2659
    %v2676 = vmul.f32 1.0, %v2675
    %v2677 = vrcp.pop %v2660
    %v2678 = vmul.f32 1.0, %v2677
    %v2679 = vrcp.pop %v2661
    %v2680 = vmul.f32 1.0, %v2679
    %v2681 = vrcp.pop %v2662
    %v2682 = vmul.f32 1.0, %v2681
    %v2683 = vrcp.pop %v2663
    %v2684 = vmul.f32 1.0, %v2683
    %v2685 = vrcp.pop %v2664
    %v2686 = vmul.f32 1.0, %v2685
    %v2687 = vrcp.pop %v2665
    %v2688 = vmul.f32 1.0, %v2687
    %v2689 = vrcp.pop %v2666
    %v2690 = vmul.f32 1.0, %v2689
    %v2691 = vrcp.pop %v2667
    %v2692 = vmul.f32 1.0, %v2691
    %v2693 = vrcp.pop %v2668
    %v2694 = vmul.f32 1.0, %v2693
    %v2695 = vrcp.pop %v2669
    %v2696 = vmul.f32 1.0, %v2695
    %v2697 = vrcp.pop %v2670
    %v2698 = vmul.f32 1.0, %v2697
    %2699 = vst [vmem:[%s6] sm:$0xff] %v2672
    %2700 = vst [vmem:[%s6 + $0x8] sm:$0xff] %v2674
    %2701 = vst [vmem:[%s6 + $0x10] sm:$0xff] %v2676
    %2702 = vst [vmem:[%s6 + $0x18] sm:$0xff] %v2678
    %2703 = vst [vmem:[%s6 + $0x20] sm:$0xff] %v2680
    %2704 = vst [vmem:[%s6 + $0x28] sm:$0xff] %v2682
    %vm2705 = vcmask 130048
    %2706 = vst.msk [vmem:[%s6 + $0x30] sm:$0xff] %vm2705, %v2684
    %2707 = vst [vmem:[%s6 + $0x38] sm:$0xff] %v2686
    %2708 = vst [vmem:[%s6 + $0x40] sm:$0xff] %v2688
    %2709 = vst [vmem:[%s6 + $0x48] sm:$0xff] %v2690
    %2710 = vst [vmem:[%s6 + $0x50] sm:$0xff] %v2692
    %2711 = vst [vmem:[%s6 + $0x58] sm:$0xff] %v2694
    %2712 = vst [vmem:[%s6 + $0x60] sm:$0xff] %v2696
    %2713 = vst.msk [vmem:[%s6 + $0x68] sm:$0xff] %vm2705, %v2698
    // Predicated region
    $region42: #{decoder_forward.1} parent=1 // pred_check
      _
    $region43: #{decoder_forward.1} parent=1 // pred_check_branch
      %2715 = sbr.rel (0) target = $region45
    $region44: #{decoder_forward.1} parent=1 // pred_region
      _
    $region45: #{decoder_forward.1} parent=1 // pred_fallthru
      _
    // Predicated region
    $region46: #{decoder_forward.1} parent=1 // pred_check
      _
    $region47: #{decoder_forward.1} parent=1 // pred_check_branch
      %2717 = sbr.rel (0) target = $region49
    $region48: #{decoder_forward.1} parent=1 // pred_region
      _
    $region49: #{decoder_forward.1} parent=1 // pred_fallthru
      _
    %2718 = vsyncpa [#allocation3], 1
    %2719 = vsyncpa [#allocation5], 1
    %2720 = vsyncpa [#allocation8], 1

</llo_original>
